<compile_context>
chip_gen: v6e
topology: v6e:2x2x1
jax: 0.10.0
libtpu: 0.0.40
codegen_flags: <defaults>
</compile_context>

<pallas_src>
import jax
import jax.numpy as jnp
from jax.experimental import pallas as pl
from jax.experimental.pallas import tpu as pltpu


# ---------------------------------------------------------------------------
# Pallas kernels
# ---------------------------------------------------------------------------
def _block_kernel(x_ref, wga_ref, bga_ref, wtcn_ref, wres_ref, bout_ref, o_ref):
    """One full ResidualBlock on a tile of rows.

    rows = (batch, downsampled time); input cols = (stride, joint, ch_in);
    output cols = (joint, ch_out).
      stage1: z = relu(x @ W_ga + b_ga)              # gcn(1x1) + adjacency + ReLU
      stage2: o = relu(z @ W_tcn + x @ W_res + b)    # temporal conv + residual
    bf16 MXU matmuls with f32 accumulation; bias/ReLU in f32; no HBM round-trips
    for intermediates.
    """
    x_bf = x_ref[...].astype(jnp.bfloat16)
    z = jnp.dot(x_bf, wga_ref[...], preferred_element_type=jnp.float32)
    z = jnp.maximum(z + bga_ref[...], 0.0)
    acc = jnp.dot(z.astype(jnp.bfloat16), wtcn_ref[...],
                  preferred_element_type=jnp.float32)
    acc = acc + jnp.dot(x_bf, wres_ref[...], preferred_element_type=jnp.float32)
    acc = acc + bout_ref[...]
    o_ref[...] = jnp.maximum(acc, 0.0).astype(o_ref.dtype)


def _head_kernel(x_ref, w_ref, b_ref, o_ref):
    """Fused fc_mu + fc_logvar: one matmul against concatenated head weights."""
    acc = jnp.dot(x_ref[...].astype(jnp.bfloat16), w_ref[...],
                  preferred_element_type=jnp.float32)
    o_ref[...] = (acc + b_ref[...]).astype(o_ref.dtype)


def _row_tile(m):
    return m if m <= 512 else 512


def fused_residual_block(x3, wga, bga, wtcn, wres, bout):
    M, Kin = x3.shape
    Kmid = wga.shape[1]
    N = wtcn.shape[1]
    tm = _row_tile(M)
    return pl.pallas_call(
        _block_kernel,
        out_shape=jax.ShapeDtypeStruct((M, N), jnp.float32),
        grid=(pl.cdiv(M, tm),),
        in_specs=[
            pl.BlockSpec((tm, Kin), lambda i: (i, 0)),
            pl.BlockSpec((Kin, Kmid), lambda i: (0, 0)),
            pl.BlockSpec((1, Kmid), lambda i: (0, 0)),
            pl.BlockSpec((Kmid, N), lambda i: (0, 0)),
            pl.BlockSpec((Kin, N), lambda i: (0, 0)),
            pl.BlockSpec((1, N), lambda i: (0, 0)),
        ],
        out_specs=pl.BlockSpec((tm, N), lambda i: (i, 0)),
        compiler_params=pltpu.CompilerParams(dimension_semantics=("parallel",)),
    )(x3, wga, bga, wtcn, wres, bout)


def fused_heads(xf, w_head, b_head):
    M, K = xf.shape
    N = w_head.shape[1]
    tm = _row_tile(M)
    return pl.pallas_call(
        _head_kernel,
        out_shape=jax.ShapeDtypeStruct((M, N), jnp.float32),
        grid=(pl.cdiv(M, tm),),
        in_specs=[
            pl.BlockSpec((tm, K), lambda i: (i, 0)),
            pl.BlockSpec((K, N), lambda i: (0, 0)),
            pl.BlockSpec((1, N), lambda i: (0, 0)),
        ],
        out_specs=pl.BlockSpec((tm, N), lambda i: (i, 0)),
        compiler_params=pltpu.CompilerParams(dimension_semantics=("parallel",)),
    )(xf, w_head, b_head)


# ---------------------------------------------------------------------------
# Parameters (PyTorch-layout) and one-time weight folding
# ---------------------------------------------------------------------------
STRIDES = (2, 2, 3)


def build_adjacency(adjacency_list, num_joints):
    A = jnp.zeros((num_joints, num_joints), jnp.float32)
    for i, j in adjacency_list:
        A = A.at[i, j].set(1.0).at[j, i].set(1.0)
    A = A + jnp.eye(num_joints, dtype=jnp.float32)      # self loops
    deg = jnp.sum(A, axis=1, keepdims=True)
    return A / deg                                       # row-normalized


def _block_params(key, c_in, c_out, stride, scale=0.1):
    k = jax.random.split(key, 3)
    return {
        "w_gcn": scale * jax.random.normal(k[0], (c_in, c_out), jnp.float32),
        "b_gcn": jnp.zeros((c_out,), jnp.float32),
        "w_tcn": scale * jax.random.normal(k[1], (stride * c_out, c_out), jnp.float32),
        "b_tcn": jnp.zeros((c_out,), jnp.float32),
        "w_res": scale * jax.random.normal(k[2], (stride * c_in, c_out), jnp.float32),
        "b_res": jnp.zeros((c_out,), jnp.float32),
    }


def init_encoder_params(key, in_channels, latent_dim, num_joints, seq_len):
    k = jax.random.split(key, 5)
    t_out = ((seq_len // 2) // 2) // 3
    flat = (in_channels * 4) * t_out * num_joints        # == utils.get_flat_layer_size
    return {
        "block1": _block_params(k[0], in_channels, in_channels, 2),
        "block2": _block_params(k[1], in_channels, in_channels * 2, 2),
        "block3": _block_params(k[2], in_channels * 2, in_channels * 4, 3),
        "w_mu": 0.1 * jax.random.normal(k[3], (flat, latent_dim), jnp.float32),
        "b_mu": jnp.zeros((latent_dim,), jnp.float32),
        "w_lv": 0.1 * jax.random.normal(k[4], (flat, latent_dim), jnp.float32),
        "b_lv": jnp.zeros((latent_dim,), jnp.float32),
    }


def _blockdiag_over_joints(w, stride, c_in, c_out, V):
    """(stride*c_in, c_out) -> (stride*V*c_in, V*c_out), block-diagonal over joints."""
    ws = w.reshape(stride, c_in, c_out)
    eye = jnp.eye(V, dtype=w.dtype)
    big = eye[None, :, None, :, None] * ws[:, None, :, None, :]   # (s, w, ci, v, co)
    return big.reshape(stride * V * c_in, V * c_out)


def _fold_block(p, A, stride, c_in, c_out, V, wdtype=jnp.bfloat16):
    # gcn(1x1) + adjacency folded into one matrix:
    #   W_ga[(s,w,ci),(s,v,co)] = A[w,v] * W_gcn[ci,co]   (block-diag over s)
    w_ga = jnp.kron(A, p["w_gcn"])                         # (V*Cin, V*Cout)
    w_ga_big = jnp.kron(jnp.eye(stride, dtype=w_ga.dtype), w_ga)
    b_ga = jnp.kron(jnp.sum(A, axis=0), p["b_gcn"])        # bias passes through A
    b_ga_big = jnp.tile(b_ga, stride)[None, :]
    w_tcn_big = _blockdiag_over_joints(p["w_tcn"], stride, c_out, c_out, V)
    w_res_big = _blockdiag_over_joints(p["w_res"], stride, c_in, c_out, V)
    b_out = jnp.tile(p["b_tcn"] + p["b_res"], V)[None, :]
    return {
        "w_ga": w_ga_big.astype(wdtype),
        "b_ga": b_ga_big.astype(jnp.float32),
        "w_tcn": w_tcn_big.astype(wdtype),
        "w_res": w_res_big.astype(wdtype),
        "b_out": b_out.astype(jnp.float32),
    }


def _fold_heads(params, c3, t3, V, wdtype=jnp.bfloat16):
    # Row-permute FC weights so they consume the (t, v, c) channels-last flatten
    # directly (matches PyTorch's (c, t, v) flatten of NCHW), and concat mu|logvar.
    def perm(w):
        flat, L = w.shape
        return w.reshape(c3, t3, V, L).transpose(1, 2, 0, 3).reshape(flat, L)

    w_head = jnp.concatenate([perm(params["w_mu"]), perm(params["w_lv"])], axis=1)
    b_head = jnp.concatenate([params["b_mu"], params["b_lv"]])[None, :]
    return w_head.astype(wdtype), b_head.astype(jnp.float32)


def prepare_encoder(params, adjacency_list, in_channels, num_joints, seq_len):
    A = build_adjacency(adjacency_list, num_joints)
    folded = {
        "block1": _fold_block(params["block1"], A, 2, in_channels, in_channels, num_joints),
        "block2": _fold_block(params["block2"], A, 2, in_channels, in_channels * 2, num_joints),
        "block3": _fold_block(params["block3"], A, 3, in_channels * 2, in_channels * 4, num_joints),
    }
    t3 = ((seq_len // 2) // 2) // 3
    w_head, b_head = _fold_heads(params, in_channels * 4, t3, num_joints)
    folded["w_head"] = w_head
    folded["b_head"] = b_head
    return folded


# ---------------------------------------------------------------------------
# Forward pass: 4 pallas_call launches, reshapes between them are contiguous no-ops
# ---------------------------------------------------------------------------
def _regroup_time(act, B, T, stride):
    """(B*T, D) -> (B*(T//stride), stride*D); drops trailing steps if T % stride."""
    D = act.shape[1]
    Tp = T // stride
    if Tp * stride != T:
        act = act.reshape(B, T, D)[:, : Tp * stride].reshape(B * Tp * stride, D)
    return act.reshape(B * Tp, stride * D), Tp


def encoder_forward(x, folded, strides=STRIDES):
    # x: (B, C, T, V)  -- PyTorch NCHW (H = time, W = joints)
    B, C, T, V = x.shape
    # Single XLA transpose of the raw input to channels-last rows=(b,t), cols=(v,c).
    act = jnp.transpose(x, (0, 2, 3, 1)).reshape(B * T, V * C).astype(jnp.float32)
    t = T
    for name, stride in zip(("block1", "block2", "block3"), strides):
        act, t = _regroup_time(act, B, t, stride)
        p = folded[name]
        act = fused_residual_block(act, p["w_ga"], p["b_ga"],
                                   p["w_tcn"], p["w_res"], p["b_out"])
    xf = act.reshape(B, -1)                  # already in the order the head expects
    out = fused_heads(xf, folded["w_head"], folded["b_head"])
    L = out.shape[1] // 2
    return out[:, :L], out[:, L:]


# ---------------------------------------------------------------------------
# Pure-JAX reference (same math, f32) for a sanity check of the weight folding
# ---------------------------------------------------------------------------
def _reference_forward(x, params, A, strides=STRIDES):
    def block(xcl, p, stride):
        B, T, V, Cin = xcl.shape
        Cout = p["w_gcn"].shape[1]
        y = xcl.reshape(B * T * V, Cin) @ p["w_gcn"] + p["b_gcn"]
        y = y.reshape(B, T, V, Cout)
        y = jnp.maximum(jnp.einsum("btwc,wv->btvc", y, A), 0.0)
        Tp = T // stride
        yt = (y[:, : Tp * stride].reshape(B, Tp, stride, V, Cout)
              .transpose(0, 1, 3, 2, 4).reshape(B * Tp * V, stride * Cout))
        xr = (xcl[:, : Tp * stride].reshape(B, Tp, stride, V, Cin)
              .transpose(0, 1, 3, 2, 4).reshape(B * Tp * V, stride * Cin))
        o = jnp.maximum(yt @ p["w_tcn"] + p["b_tcn"] + xr @ p["w_res"] + p["b_res"], 0.0)
        return o.reshape(B, Tp, V, Cout)

    xcl = jnp.transpose(x, (0, 2, 3, 1))
    for name, s in zip(("block1", "block2", "block3"), strides):
        xcl = block(xcl, params[name], s)
    B = x.shape[0]
    xf = jnp.transpose(xcl, (0, 3, 1, 2)).reshape(B, -1)
    return xf @ params["w_mu"] + params["b_mu"], xf @ params["w_lv"] + params["b_lv"]


# ---------------------------------------------------------------------------
if __name__ == "__main__":
    key = jax.random.PRNGKey(0)

    batch = 2
    in_channels = 4
    latent_dim = 8
    num_joints = 5
    seq_len = 12                       # strides 2*2*3 -> final temporal size 1
    adjacency_list = [(0, 1), (1, 2), (2, 3), (3, 4), (1, 4)]

    k_param, k_x = jax.random.split(key)
    params = init_encoder_params(k_param, in_channels, latent_dim, num_joints, seq_len)
    folded = prepare_encoder(params, adjacency_list, in_channels, num_joints, seq_len)

    x = jax.random.normal(k_x, (batch, in_channels, seq_len, num_joints), jnp.float32)

    fwd = jax.jit(encoder_forward)
    mu, logvar = fwd(x, folded)
    jax.block_until_ready((mu, logvar))

    assert mu.shape == (batch, latent_dim) and logvar.shape == (batch, latent_dim)

    # sanity-check the fused/bf16 kernels against the f32 reference (loose tol for bf16)
    A = build_adjacency(adjacency_list, num_joints)
    mu_ref, lv_ref = _reference_forward(x, params, A)
    scale = float(jnp.maximum(jnp.max(jnp.abs(mu_ref)), jnp.max(jnp.abs(lv_ref))))
    err = float(jnp.maximum(jnp.max(jnp.abs(mu - mu_ref)), jnp.max(jnp.abs(logvar - lv_ref))))
    assert err <= 0.1 * scale + 1e-3, (err, scale)

    print("KERNEL_OK")
</pallas_src>

<mosaic_0001>
module attributes {stable_mosaic.version = 11 : i64} {
  func.func @_block_kernel(%arg0: i32, %arg1: memref<12x40xf32, #tpu.memory_space<vmem>>, %arg2: memref<40x40xbf16, #tpu.memory_space<vmem>>, %arg3: memref<1x40xf32, #tpu.memory_space<vmem>>, %arg4: memref<40x20xbf16, #tpu.memory_space<vmem>>, %arg5: memref<40x20xbf16, #tpu.memory_space<vmem>>, %arg6: memref<1x20xf32, #tpu.memory_space<vmem>>, %arg7: memref<12x20xf32, #tpu.memory_space<vmem>>) attributes {dimension_semantics = [#tpu.dimension_semantics<parallel>], iteration_bounds = array<i64: 1>, scalar_prefetch = 0 : i64, scratch_operands = 0 : i64, tpu.core_type = #tpu.core_type<tc>, window_params = [{transform_indices = @transform_0, window_bounds = array<i64: 12, 40>}, {pipeline_mode = #tpu.pipeline_mode<synchronous>, transform_indices = @transform_1, window_bounds = array<i64: 40, 40>}, {pipeline_mode = #tpu.pipeline_mode<synchronous>, transform_indices = @transform_2, window_bounds = array<i64: 1, 40>}, {pipeline_mode = #tpu.pipeline_mode<synchronous>, transform_indices = @transform_3, window_bounds = array<i64: 40, 20>}, {pipeline_mode = #tpu.pipeline_mode<synchronous>, transform_indices = @transform_4, window_bounds = array<i64: 40, 20>}, {pipeline_mode = #tpu.pipeline_mode<synchronous>, transform_indices = @transform_5, window_bounds = array<i64: 1, 20>}, {transform_indices = @transform_6, window_bounds = array<i64: 12, 20>}]} {
    %c0 = arith.constant 0 : index
    %c0_0 = arith.constant 0 : index
    %0 = vector.load %arg1[%c0, %c0_0] : memref<12x40xf32, #tpu.memory_space<vmem>>, vector<12x40xf32>
    %1 = arith.truncf %0 : vector<12x40xf32> to vector<12x40xbf16>
    %c0_1 = arith.constant 0 : index
    %c0_2 = arith.constant 0 : index
    %2 = vector.load %arg2[%c0_1, %c0_2] : memref<40x40xbf16, #tpu.memory_space<vmem>>, vector<40x40xbf16>
    %cst = arith.constant dense<0.000000e+00> : vector<12x40xf32>
    %3 = tpu.matmul %1, %2, %cst {dimension_numbers = #tpu.dot_dimension_numbers<[1], [0], [0], [1], [0, 0, 1, 1], [], []>} : vector<12x40xbf16>, vector<40x40xbf16>, vector<12x40xf32> -> vector<12x40xf32>
    %c0_3 = arith.constant 0 : index
    %c0_4 = arith.constant 0 : index
    %4 = vector.load %arg3[%c0_3, %c0_4] : memref<1x40xf32, #tpu.memory_space<vmem>>, vector<1x40xf32>
    %5 = vector.broadcast %4 : vector<1x40xf32> to vector<12x40xf32>
    %6 = arith.addf %3, %5 : vector<12x40xf32>
    %cst_5 = arith.constant 0.000000e+00 : f32
    %7 = vector.broadcast %cst_5 : f32 to vector<12x40xf32>
    %8 = arith.maximumf %6, %7 : vector<12x40xf32>
    %9 = arith.truncf %8 : vector<12x40xf32> to vector<12x40xbf16>
    %c0_6 = arith.constant 0 : index
    %c0_7 = arith.constant 0 : index
    %10 = vector.load %arg4[%c0_6, %c0_7] : memref<40x20xbf16, #tpu.memory_space<vmem>>, vector<40x20xbf16>
    %cst_8 = arith.constant dense<0.000000e+00> : vector<12x20xf32>
    %11 = tpu.matmul %9, %10, %cst_8 {dimension_numbers = #tpu.dot_dimension_numbers<[1], [0], [0], [1], [0, 0, 1, 1], [], []>} : vector<12x40xbf16>, vector<40x20xbf16>, vector<12x20xf32> -> vector<12x20xf32>
    %c0_9 = arith.constant 0 : index
    %c0_10 = arith.constant 0 : index
    %12 = vector.load %arg5[%c0_9, %c0_10] : memref<40x20xbf16, #tpu.memory_space<vmem>>, vector<40x20xbf16>
    %cst_11 = arith.constant dense<0.000000e+00> : vector<12x20xf32>
    %13 = tpu.matmul %1, %12, %cst_11 {dimension_numbers = #tpu.dot_dimension_numbers<[1], [0], [0], [1], [0, 0, 1, 1], [], []>} : vector<12x40xbf16>, vector<40x20xbf16>, vector<12x20xf32> -> vector<12x20xf32>
    %14 = arith.addf %11, %13 : vector<12x20xf32>
    %c0_12 = arith.constant 0 : index
    %c0_13 = arith.constant 0 : index
    %15 = vector.load %arg6[%c0_12, %c0_13] : memref<1x20xf32, #tpu.memory_space<vmem>>, vector<1x20xf32>
    %16 = vector.broadcast %15 : vector<1x20xf32> to vector<12x20xf32>
    %17 = arith.addf %14, %16 : vector<12x20xf32>
    %cst_14 = arith.constant 0.000000e+00 : f32
    %18 = vector.broadcast %cst_14 : f32 to vector<12x20xf32>
    %19 = arith.maximumf %17, %18 : vector<12x20xf32>
    %c0_15 = arith.constant 0 : index
    %c0_16 = arith.constant 0 : index
    %20 = vector.load %arg7[%c0_15, %c0_16] : memref<12x20xf32, #tpu.memory_space<vmem>>, vector<12x20xf32>
    tpu.vector_store %arg7[%c0_15, %c0_16], %19 {strides = array<i32>} : memref<12x20xf32, #tpu.memory_space<vmem>>, vector<12x20xf32>,
    return
  }
  func.func @transform_0(%arg0: i32) -> (i32, i32) {
    %c0_i32 = arith.constant 0 : i32
    %c0_i32_0 = arith.constant 0 : i32
    return %arg0, %c0_i32 : i32, i32
  }
  func.func @transform_1(%arg0: i32) -> (i32, i32) {
    %c0_i32 = arith.constant 0 : i32
    %c0_i32_0 = arith.constant 0 : i32
    %c0_i32_1 = arith.constant 0 : i32
    return %c0_i32, %c0_i32_0 : i32, i32
  }
  func.func @transform_2(%arg0: i32) -> (i32, i32) {
    %c0_i32 = arith.constant 0 : i32
    %c0_i32_0 = arith.constant 0 : i32
    %c0_i32_1 = arith.constant 0 : i32
    return %c0_i32, %c0_i32_0 : i32, i32
  }
  func.func @transform_3(%arg0: i32) -> (i32, i32) {
    %c0_i32 = arith.constant 0 : i32
    %c0_i32_0 = arith.constant 0 : i32
    %c0_i32_1 = arith.constant 0 : i32
    return %c0_i32, %c0_i32_0 : i32, i32
  }
  func.func @transform_4(%arg0: i32) -> (i32, i32) {
    %c0_i32 = arith.constant 0 : i32
    %c0_i32_0 = arith.constant 0 : i32
    %c0_i32_1 = arith.constant 0 : i32
    return %c0_i32, %c0_i32_0 : i32, i32
  }
  func.func @transform_5(%arg0: i32) -> (i32, i32) {
    %c0_i32 = arith.constant 0 : i32
    %c0_i32_0 = arith.constant 0 : i32
    %c0_i32_1 = arith.constant 0 : i32
    return %c0_i32, %c0_i32_0 : i32, i32
  }
  func.func @transform_6(%arg0: i32) -> (i32, i32) {
    %c0_i32 = arith.constant 0 : i32
    %c0_i32_0 = arith.constant 0 : i32
    return %arg0, %c0_i32 : i32, i32
  }
}

module attributes {stable_mosaic.version = 11 : i64} {
  func.func @_block_kernel(%arg0: i32, %arg1: memref<6x40xf32, #tpu.memory_space<vmem>>, %arg2: memref<40x80xbf16, #tpu.memory_space<vmem>>, %arg3: memref<1x80xf32, #tpu.memory_space<vmem>>, %arg4: memref<80x40xbf16, #tpu.memory_space<vmem>>, %arg5: memref<40x40xbf16, #tpu.memory_space<vmem>>, %arg6: memref<1x40xf32, #tpu.memory_space<vmem>>, %arg7: memref<6x40xf32, #tpu.memory_space<vmem>>) attributes {dimension_semantics = [#tpu.dimension_semantics<parallel>], iteration_bounds = array<i64: 1>, scalar_prefetch = 0 : i64, scratch_operands = 0 : i64, tpu.core_type = #tpu.core_type<tc>, window_params = [{transform_indices = @transform_0, window_bounds = array<i64: 6, 40>}, {pipeline_mode = #tpu.pipeline_mode<synchronous>, transform_indices = @transform_1, window_bounds = array<i64: 40, 80>}, {pipeline_mode = #tpu.pipeline_mode<synchronous>, transform_indices = @transform_2, window_bounds = array<i64: 1, 80>}, {pipeline_mode = #tpu.pipeline_mode<synchronous>, transform_indices = @transform_3, window_bounds = array<i64: 80, 40>}, {pipeline_mode = #tpu.pipeline_mode<synchronous>, transform_indices = @transform_4, window_bounds = array<i64: 40, 40>}, {pipeline_mode = #tpu.pipeline_mode<synchronous>, transform_indices = @transform_5, window_bounds = array<i64: 1, 40>}, {transform_indices = @transform_6, window_bounds = array<i64: 6, 40>}]} {
    %c0 = arith.constant 0 : index
    %c0_0 = arith.constant 0 : index
    %0 = vector.load %arg1[%c0, %c0_0] : memref<6x40xf32, #tpu.memory_space<vmem>>, vector<6x40xf32>
    %1 = arith.truncf %0 : vector<6x40xf32> to vector<6x40xbf16>
    %c0_1 = arith.constant 0 : index
    %c0_2 = arith.constant 0 : index
    %2 = vector.load %arg2[%c0_1, %c0_2] : memref<40x80xbf16, #tpu.memory_space<vmem>>, vector<40x80xbf16>
    %cst = arith.constant dense<0.000000e+00> : vector<6x80xf32>
    %3 = tpu.matmul %1, %2, %cst {dimension_numbers = #tpu.dot_dimension_numbers<[1], [0], [0], [1], [0, 0, 1, 1], [], []>} : vector<6x40xbf16>, vector<40x80xbf16>, vector<6x80xf32> -> vector<6x80xf32>
    %c0_3 = arith.constant 0 : index
    %c0_4 = arith.constant 0 : index
    %4 = vector.load %arg3[%c0_3, %c0_4] : memref<1x80xf32, #tpu.memory_space<vmem>>, vector<1x80xf32>
    %5 = vector.broadcast %4 : vector<1x80xf32> to vector<6x80xf32>
    %6 = arith.addf %3, %5 : vector<6x80xf32>
    %cst_5 = arith.constant 0.000000e+00 : f32
    %7 = vector.broadcast %cst_5 : f32 to vector<6x80xf32>
    %8 = arith.maximumf %6, %7 : vector<6x80xf32>
    %9 = arith.truncf %8 : vector<6x80xf32> to vector<6x80xbf16>
    %c0_6 = arith.constant 0 : index
    %c0_7 = arith.constant 0 : index
    %10 = vector.load %arg4[%c0_6, %c0_7] : memref<80x40xbf16, #tpu.memory_space<vmem>>, vector<80x40xbf16>
    %cst_8 = arith.constant dense<0.000000e+00> : vector<6x40xf32>
    %11 = tpu.matmul %9, %10, %cst_8 {dimension_numbers = #tpu.dot_dimension_numbers<[1], [0], [0], [1], [0, 0, 1, 1], [], []>} : vector<6x80xbf16>, vector<80x40xbf16>, vector<6x40xf32> -> vector<6x40xf32>
    %c0_9 = arith.constant 0 : index
    %c0_10 = arith.constant 0 : index
    %12 = vector.load %arg5[%c0_9, %c0_10] : memref<40x40xbf16, #tpu.memory_space<vmem>>, vector<40x40xbf16>
    %cst_11 = arith.constant dense<0.000000e+00> : vector<6x40xf32>
    %13 = tpu.matmul %1, %12, %cst_11 {dimension_numbers = #tpu.dot_dimension_numbers<[1], [0], [0], [1], [0, 0, 1, 1], [], []>} : vector<6x40xbf16>, vector<40x40xbf16>, vector<6x40xf32> -> vector<6x40xf32>
    %14 = arith.addf %11, %13 : vector<6x40xf32>
    %c0_12 = arith.constant 0 : index
    %c0_13 = arith.constant 0 : index
    %15 = vector.load %arg6[%c0_12, %c0_13] : memref<1x40xf32, #tpu.memory_space<vmem>>, vector<1x40xf32>
    %16 = vector.broadcast %15 : vector<1x40xf32> to vector<6x40xf32>
    %17 = arith.addf %14, %16 : vector<6x40xf32>
    %cst_14 = arith.constant 0.000000e+00 : f32
    %18 = vector.broadcast %cst_14 : f32 to vector<6x40xf32>
    %19 = arith.maximumf %17, %18 : vector<6x40xf32>
    %c0_15 = arith.constant 0 : index
    %c0_16 = arith.constant 0 : index
    %20 = vector.load %arg7[%c0_15, %c0_16] : memref<6x40xf32, #tpu.memory_space<vmem>>, vector<6x40xf32>
    tpu.vector_store %arg7[%c0_15, %c0_16], %19 {strides = array<i32>} : memref<6x40xf32, #tpu.memory_space<vmem>>, vector<6x40xf32>,
    return
  }
  func.func @transform_0(%arg0: i32) -> (i32, i32) {
    %c0_i32 = arith.constant 0 : i32
    %c0_i32_0 = arith.constant 0 : i32
    return %arg0, %c0_i32 : i32, i32
  }
  func.func @transform_1(%arg0: i32) -> (i32, i32) {
    %c0_i32 = arith.constant 0 : i32
    %c0_i32_0 = arith.constant 0 : i32
    %c0_i32_1 = arith.constant 0 : i32
    return %c0_i32, %c0_i32_0 : i32, i32
  }
  func.func @transform_2(%arg0: i32) -> (i32, i32) {
    %c0_i32 = arith.constant 0 : i32
    %c0_i32_0 = arith.constant 0 : i32
    %c0_i32_1 = arith.constant 0 : i32
    return %c0_i32, %c0_i32_0 : i32, i32
  }
  func.func @transform_3(%arg0: i32) -> (i32, i32) {
    %c0_i32 = arith.constant 0 : i32
    %c0_i32_0 = arith.constant 0 : i32
    %c0_i32_1 = arith.constant 0 : i32
    return %c0_i32, %c0_i32_0 : i32, i32
  }
  func.func @transform_4(%arg0: i32) -> (i32, i32) {
    %c0_i32 = arith.constant 0 : i32
    %c0_i32_0 = arith.constant 0 : i32
    %c0_i32_1 = arith.constant 0 : i32
    return %c0_i32, %c0_i32_0 : i32, i32
  }
  func.func @transform_5(%arg0: i32) -> (i32, i32) {
    %c0_i32 = arith.constant 0 : i32
    %c0_i32_0 = arith.constant 0 : i32
    %c0_i32_1 = arith.constant 0 : i32
    return %c0_i32, %c0_i32_0 : i32, i32
  }
  func.func @transform_6(%arg0: i32) -> (i32, i32) {
    %c0_i32 = arith.constant 0 : i32
    %c0_i32_0 = arith.constant 0 : i32
    return %arg0, %c0_i32 : i32, i32
  }
}

module attributes {stable_mosaic.version = 11 : i64} {
  func.func @_block_kernel(%arg0: i32, %arg1: memref<2x120xf32, #tpu.memory_space<vmem>>, %arg2: memref<120x240xbf16, #tpu.memory_space<vmem>>, %arg3: memref<1x240xf32, #tpu.memory_space<vmem>>, %arg4: memref<240x80xbf16, #tpu.memory_space<vmem>>, %arg5: memref<120x80xbf16, #tpu.memory_space<vmem>>, %arg6: memref<1x80xf32, #tpu.memory_space<vmem>>, %arg7: memref<2x80xf32, #tpu.memory_space<vmem>>) attributes {dimension_semantics = [#tpu.dimension_semantics<parallel>], iteration_bounds = array<i64: 1>, scalar_prefetch = 0 : i64, scratch_operands = 0 : i64, tpu.core_type = #tpu.core_type<tc>, window_params = [{transform_indices = @transform_0, window_bounds = array<i64: 2, 120>}, {pipeline_mode = #tpu.pipeline_mode<synchronous>, transform_indices = @transform_1, window_bounds = array<i64: 120, 240>}, {pipeline_mode = #tpu.pipeline_mode<synchronous>, transform_indices = @transform_2, window_bounds = array<i64: 1, 240>}, {pipeline_mode = #tpu.pipeline_mode<synchronous>, transform_indices = @transform_3, window_bounds = array<i64: 240, 80>}, {pipeline_mode = #tpu.pipeline_mode<synchronous>, transform_indices = @transform_4, window_bounds = array<i64: 120, 80>}, {pipeline_mode = #tpu.pipeline_mode<synchronous>, transform_indices = @transform_5, window_bounds = array<i64: 1, 80>}, {transform_indices = @transform_6, window_bounds = array<i64: 2, 80>}]} {
    %c0 = arith.constant 0 : index
    %c0_0 = arith.constant 0 : index
    %0 = vector.load %arg1[%c0, %c0_0] : memref<2x120xf32, #tpu.memory_space<vmem>>, vector<2x120xf32>
    %1 = arith.truncf %0 : vector<2x120xf32> to vector<2x120xbf16>
    %c0_1 = arith.constant 0 : index
    %c0_2 = arith.constant 0 : index
    %2 = vector.load %arg2[%c0_1, %c0_2] : memref<120x240xbf16, #tpu.memory_space<vmem>>, vector<120x240xbf16>
    %cst = arith.constant dense<0.000000e+00> : vector<2x240xf32>
    %3 = tpu.matmul %1, %2, %cst {dimension_numbers = #tpu.dot_dimension_numbers<[1], [0], [0], [1], [0, 0, 1, 1], [], []>} : vector<2x120xbf16>, vector<120x240xbf16>, vector<2x240xf32> -> vector<2x240xf32>
    %c0_3 = arith.constant 0 : index
    %c0_4 = arith.constant 0 : index
    %4 = vector.load %arg3[%c0_3, %c0_4] : memref<1x240xf32, #tpu.memory_space<vmem>>, vector<1x240xf32>
    %5 = vector.broadcast %4 : vector<1x240xf32> to vector<2x240xf32>
    %6 = arith.addf %3, %5 : vector<2x240xf32>
    %cst_5 = arith.constant 0.000000e+00 : f32
    %7 = vector.broadcast %cst_5 : f32 to vector<2x240xf32>
    %8 = arith.maximumf %6, %7 : vector<2x240xf32>
    %9 = arith.truncf %8 : vector<2x240xf32> to vector<2x240xbf16>
    %c0_6 = arith.constant 0 : index
    %c0_7 = arith.constant 0 : index
    %10 = vector.load %arg4[%c0_6, %c0_7] : memref<240x80xbf16, #tpu.memory_space<vmem>>, vector<240x80xbf16>
    %cst_8 = arith.constant dense<0.000000e+00> : vector<2x80xf32>
    %11 = tpu.matmul %9, %10, %cst_8 {dimension_numbers = #tpu.dot_dimension_numbers<[1], [0], [0], [1], [0, 0, 1, 1], [], []>} : vector<2x240xbf16>, vector<240x80xbf16>, vector<2x80xf32> -> vector<2x80xf32>
    %c0_9 = arith.constant 0 : index
    %c0_10 = arith.constant 0 : index
    %12 = vector.load %arg5[%c0_9, %c0_10] : memref<120x80xbf16, #tpu.memory_space<vmem>>, vector<120x80xbf16>
    %cst_11 = arith.constant dense<0.000000e+00> : vector<2x80xf32>
    %13 = tpu.matmul %1, %12, %cst_11 {dimension_numbers = #tpu.dot_dimension_numbers<[1], [0], [0], [1], [0, 0, 1, 1], [], []>} : vector<2x120xbf16>, vector<120x80xbf16>, vector<2x80xf32> -> vector<2x80xf32>
    %14 = arith.addf %11, %13 : vector<2x80xf32>
    %c0_12 = arith.constant 0 : index
    %c0_13 = arith.constant 0 : index
    %15 = vector.load %arg6[%c0_12, %c0_13] : memref<1x80xf32, #tpu.memory_space<vmem>>, vector<1x80xf32>
    %16 = vector.broadcast %15 : vector<1x80xf32> to vector<2x80xf32>
    %17 = arith.addf %14, %16 : vector<2x80xf32>
    %cst_14 = arith.constant 0.000000e+00 : f32
    %18 = vector.broadcast %cst_14 : f32 to vector<2x80xf32>
    %19 = arith.maximumf %17, %18 : vector<2x80xf32>
    %c0_15 = arith.constant 0 : index
    %c0_16 = arith.constant 0 : index
    %20 = vector.load %arg7[%c0_15, %c0_16] : memref<2x80xf32, #tpu.memory_space<vmem>>, vector<2x80xf32>
    tpu.vector_store %arg7[%c0_15, %c0_16], %19 {strides = array<i32>} : memref<2x80xf32, #tpu.memory_space<vmem>>, vector<2x80xf32>,
    return
  }
  func.func @transform_0(%arg0: i32) -> (i32, i32) {
    %c0_i32 = arith.constant 0 : i32
    %c0_i32_0 = arith.constant 0 : i32
    return %arg0, %c0_i32 : i32, i32
  }
  func.func @transform_1(%arg0: i32) -> (i32, i32) {
    %c0_i32 = arith.constant 0 : i32
    %c0_i32_0 = arith.constant 0 : i32
    %c0_i32_1 = arith.constant 0 : i32
    return %c0_i32, %c0_i32_0 : i32, i32
  }
  func.func @transform_2(%arg0: i32) -> (i32, i32) {
    %c0_i32 = arith.constant 0 : i32
    %c0_i32_0 = arith.constant 0 : i32
    %c0_i32_1 = arith.constant 0 : i32
    return %c0_i32, %c0_i32_0 : i32, i32
  }
  func.func @transform_3(%arg0: i32) -> (i32, i32) {
    %c0_i32 = arith.constant 0 : i32
    %c0_i32_0 = arith.constant 0 : i32
    %c0_i32_1 = arith.constant 0 : i32
    return %c0_i32, %c0_i32_0 : i32, i32
  }
  func.func @transform_4(%arg0: i32) -> (i32, i32) {
    %c0_i32 = arith.constant 0 : i32
    %c0_i32_0 = arith.constant 0 : i32
    %c0_i32_1 = arith.constant 0 : i32
    return %c0_i32, %c0_i32_0 : i32, i32
  }
  func.func @transform_5(%arg0: i32) -> (i32, i32) {
    %c0_i32 = arith.constant 0 : i32
    %c0_i32_0 = arith.constant 0 : i32
    %c0_i32_1 = arith.constant 0 : i32
    return %c0_i32, %c0_i32_0 : i32, i32
  }
  func.func @transform_6(%arg0: i32) -> (i32, i32) {
    %c0_i32 = arith.constant 0 : i32
    %c0_i32_0 = arith.constant 0 : i32
    return %arg0, %c0_i32 : i32, i32
  }
}

module attributes {stable_mosaic.version = 11 : i64} {
  func.func @_head_kernel(%arg0: i32, %arg1: memref<2x80xf32, #tpu.memory_space<vmem>>, %arg2: memref<80x16xbf16, #tpu.memory_space<vmem>>, %arg3: memref<1x16xf32, #tpu.memory_space<vmem>>, %arg4: memref<2x16xf32, #tpu.memory_space<vmem>>) attributes {dimension_semantics = [#tpu.dimension_semantics<parallel>], iteration_bounds = array<i64: 1>, scalar_prefetch = 0 : i64, scratch_operands = 0 : i64, tpu.core_type = #tpu.core_type<tc>, window_params = [{transform_indices = @transform_0, window_bounds = array<i64: 2, 80>}, {pipeline_mode = #tpu.pipeline_mode<synchronous>, transform_indices = @transform_1, window_bounds = array<i64: 80, 16>}, {pipeline_mode = #tpu.pipeline_mode<synchronous>, transform_indices = @transform_2, window_bounds = array<i64: 1, 16>}, {transform_indices = @transform_3, window_bounds = array<i64: 2, 16>}]} {
    %c0 = arith.constant 0 : index
    %c0_0 = arith.constant 0 : index
    %0 = vector.load %arg1[%c0, %c0_0] : memref<2x80xf32, #tpu.memory_space<vmem>>, vector<2x80xf32>
    %1 = arith.truncf %0 : vector<2x80xf32> to vector<2x80xbf16>
    %c0_1 = arith.constant 0 : index
    %c0_2 = arith.constant 0 : index
    %2 = vector.load %arg2[%c0_1, %c0_2] : memref<80x16xbf16, #tpu.memory_space<vmem>>, vector<80x16xbf16>
    %cst = arith.constant dense<0.000000e+00> : vector<2x16xf32>
    %3 = tpu.matmul %1, %2, %cst {dimension_numbers = #tpu.dot_dimension_numbers<[1], [0], [0], [1], [0, 0, 1, 1], [], []>} : vector<2x80xbf16>, vector<80x16xbf16>, vector<2x16xf32> -> vector<2x16xf32>
    %c0_3 = arith.constant 0 : index
    %c0_4 = arith.constant 0 : index
    %4 = vector.load %arg3[%c0_3, %c0_4] : memref<1x16xf32, #tpu.memory_space<vmem>>, vector<1x16xf32>
    %5 = vector.broadcast %4 : vector<1x16xf32> to vector<2x16xf32>
    %6 = arith.addf %3, %5 : vector<2x16xf32>
    %c0_5 = arith.constant 0 : index
    %c0_6 = arith.constant 0 : index
    %7 = vector.load %arg4[%c0_5, %c0_6] : memref<2x16xf32, #tpu.memory_space<vmem>>, vector<2x16xf32>
    tpu.vector_store %arg4[%c0_5, %c0_6], %6 {strides = array<i32>} : memref<2x16xf32, #tpu.memory_space<vmem>>, vector<2x16xf32>,
    return
  }
  func.func @transform_0(%arg0: i32) -> (i32, i32) {
    %c0_i32 = arith.constant 0 : i32
    %c0_i32_0 = arith.constant 0 : i32
    return %arg0, %c0_i32 : i32, i32
  }
  func.func @transform_1(%arg0: i32) -> (i32, i32) {
    %c0_i32 = arith.constant 0 : i32
    %c0_i32_0 = arith.constant 0 : i32
    %c0_i32_1 = arith.constant 0 : i32
    return %c0_i32, %c0_i32_0 : i32, i32
  }
  func.func @transform_2(%arg0: i32) -> (i32, i32) {
    %c0_i32 = arith.constant 0 : i32
    %c0_i32_0 = arith.constant 0 : i32
    %c0_i32_1 = arith.constant 0 : i32
    return %c0_i32, %c0_i32_0 : i32, i32
  }
  func.func @transform_3(%arg0: i32) -> (i32, i32) {
    %c0_i32 = arith.constant 0 : i32
    %c0_i32_0 = arith.constant 0 : i32
    return %arg0, %c0_i32 : i32, i32
  }
}

</mosaic_0001>

<llo_original>
// kernel: encoder_forward.5
$region0: #{encoder_forward.5}
  #allocation0 [shape = 'u32[]', space=smem, size = 0x4, offset = 0x4, fixed_abs, tag = 'smem constant byte address 0x4 - core index']
  #allocation1 [shape = 'u32[144,128]{1,0:T(1,128)}', space=vmem, size = 0x12000, scoped, tag = 'internal scratch']
  %s0 = inlined_call_operand.vmem [shape: f32[6,40], index: 0, kind: input, shape index: {}]
  %s1 = inlined_call_operand.vmem [shape: bf16[40,80], index: 1, kind: input, shape index: {}]
  %s2 = inlined_call_operand.vmem [shape: f32[1,80], index: 2, kind: input, shape index: {}]
  %s3 = inlined_call_operand.vmem [shape: bf16[80,40], index: 3, kind: input, shape index: {}]
  %s4 = inlined_call_operand.vmem [shape: bf16[40,40], index: 4, kind: input, shape index: {}]
  %s5 = inlined_call_operand.vmem [shape: f32[1,40], index: 5, kind: input, shape index: {}]
  %s6 = inlined_call_operand.vmem [shape: f32[6,40], index: 6, kind: output, shape index: {}]
  %s7 = sld [smem:[#allocation0]]
  $region34: #{encoder_forward.5} parent=0
    _
  %s9 = ssub.s32 1, %s7
  %s10 = scalar_select 0, %s9, %s7
  // Predicated region
  $region2: #{encoder_forward.5} parent=0 // pred_check
    _
  $region3: #{encoder_forward.5} parent=0 // pred_check_branch
    %12 = sbr.rel (0) target = $region5
  $region4: #{encoder_forward.5} parent=0 // pred_region
    _
  $region5: #{encoder_forward.5} parent=0 // pred_fallthru
    _
  // Predicated region
  $region6: #{encoder_forward.5} parent=0 // pred_check
    _
  $region7: #{encoder_forward.5} parent=0 // pred_check_branch
    %14 = sbr.rel (0) target = $region9
  $region8: #{encoder_forward.5} parent=0 // pred_region
    _
  $region9: #{encoder_forward.5} parent=0 // pred_fallthru
    _
  // Predicated region
  $region10: #{encoder_forward.5} parent=0 // pred_check
    _
  $region11: #{encoder_forward.5} parent=0 // pred_check_branch
    %16 = sbr.rel (0) target = $region13
  $region12: #{encoder_forward.5} parent=0 // pred_region
    _
  $region13: #{encoder_forward.5} parent=0 // pred_fallthru
    _
  // Predicated region
  $region14: #{encoder_forward.5} parent=0 // pred_check
    _
  $region15: #{encoder_forward.5} parent=0 // pred_check_branch
    %18 = sbr.rel (0) target = $region17
  $region16: #{encoder_forward.5} parent=0 // pred_region
    _
  $region17: #{encoder_forward.5} parent=0 // pred_fallthru
    _
  // Predicated region
  $region18: #{encoder_forward.5} parent=0 // pred_check
    _
  $region19: #{encoder_forward.5} parent=0 // pred_check_branch
    %20 = sbr.rel (0) target = $region21
  $region20: #{encoder_forward.5} parent=0 // pred_region
    _
  $region21: #{encoder_forward.5} parent=0 // pred_fallthru
    _
  // Predicated region
  $region22: #{encoder_forward.5} parent=0 // pred_check
    _
  $region23: #{encoder_forward.5} parent=0 // pred_check_branch
    %22 = sbr.rel (0) target = $region25
  $region24: #{encoder_forward.5} parent=0 // pred_region
    _
  $region25: #{encoder_forward.5} parent=0 // pred_fallthru
    _
  %v24 = vld [vmem:[%s0] sm:$0x3f]
  %v25 = vpack.c.bf16 %v24, %v24
  %v26 = vld [vmem:[%s1] sm:$0xf]
  %v27 = vld [vmem:[%s1 + $0x4] sm:$0xf]
  %v28 = vld [vmem:[%s1 + $0x8] sm:$0xf]
  %v29 = vld [vmem:[%s1 + $0xc] sm:$0xf]
  %v30 = vld [vmem:[%s1 + $0x10] sm:$0xf]
  %v31 = vld [vmem:[%s2] sm:$0x1]
  %v33 = vlaneseq
  %v34 = vshrl.u32 %v33, 7
  %v35 = vsub.s32 0, %v34
  %v36 = vrot.slane %v31, %v35
  %v43 = vunpack.c.l.b16 %v26
  %v44 = vunpack.c.l.b16 %v27
  %v45 = vunpack.c.l.b16 %v28
  %v46 = vunpack.c.l.b16 %v29
  %v47 = vunpack.c.l.b16 %v30
  %v48 = vpack.c.b16 %v44, %v43
  %v49 = vpack.c.b16 %v46, %v45
  %v50 = vpack.c.b16 %v47, %v47
  %vm53 = vcmask 326656
  %v55 = vsel %vm53, %v25, 0
  %vm57 = vcmask 1043456
  %v59 = vsel %vm57, %v50, 0
  %61 = vmatprep.subr.bf16.mxu0 0
  %62 = vmatpush1.bf16.msra.mxu0 0
  %63 = vmatprep.subr.bf16.mxu0 0
  %64 = vmatpush1.bf16.msra.mxu0 0
  %65 = vmatprep.subr.bf16.mxu0 0
  %66 = vmatpush1.bf16.msra.mxu0 0
  %67 = vmatprep.subr.bf16.mxu0 0
  %68 = vmatpush1.bf16.msra.mxu0 0
  %69 = vmatprep.subr.bf16.mxu0 0
  %70 = vmatpush1.bf16.msra.mxu0 0
  %71 = vmatprep.subr.bf16.mxu0 0
  %72 = vmatpush1.bf16.msra.mxu0 %v59
  %73 = vmatprep.subr.bf16.mxu0 0
  %74 = vmatpush1.bf16.msra.mxu0 %v49
  %75 = vmatprep.subr.bf16.mxu0 0
  %76 = vmatpush1.bf16.msra.mxu0 %v48
  %77 = vmatprep.subr.bf16.mxu0 0
  %78 = vmatpush2.bf16.msra.mxu0 0
  %79 = vmatprep.subr.bf16.mxu0 0
  %80 = vmatpush2.bf16.msra.mxu0 0
  %81 = vmatprep.subr.bf16.mxu0 0
  %82 = vmatpush2.bf16.msra.mxu0 0
  %83 = vmatprep.subr.bf16.mxu0 0
  %84 = vmatpush2.bf16.msra.mxu0 0
  %85 = vmatprep.subr.bf16.mxu0 0
  %86 = vmatpush2.bf16.msra.mxu0 0
  %87 = vmatprep.subr.bf16.mxu0 0
  %88 = vmatpush2.bf16.msra.mxu0 0
  %89 = vmatprep.subr.bf16.mxu0 0
  %90 = vmatpush2.bf16.msra.mxu0 0
  %91 = vmatprep.subr.bf16.mxu0 0
  %92 = vmatpush2.bf16.msra.mxu0 0
  %93 = vmatprep.mubr.bf16.mxu0 0
  %94 = vmatmul.mubr.bf16.gmra.mxu0 %v55
  %v95 = vpop.f32.mrf.mxu0
  %v96 = vadd.f32 %v36, %v95
  %v97 = vpop.f32.mrf.mxu0
  %v98 = vpop.f32.mrf.mxu0
  %v99 = vpop.f32.mrf.mxu0
  %100 = vdwg.mxu0
  %v101 = vmax.f32 %v96, 0.0
  %v102 = vpack.c.bf16 %v101, %v101
  %v103 = vld [vmem:[%s3] sm:$0xf]
  %v104 = vld [vmem:[%s3 + $0x4] sm:$0xf]
  %v105 = vld [vmem:[%s3 + $0x8] sm:$0xf]
  %v106 = vld [vmem:[%s3 + $0xc] sm:$0xf]
  %v107 = vld [vmem:[%s3 + $0x10] sm:$0xf]
  %v108 = vld [vmem:[%s3 + $0x14] sm:$0xf]
  %v109 = vld [vmem:[%s3 + $0x18] sm:$0xf]
  %v110 = vld [vmem:[%s3 + $0x1c] sm:$0xf]
  %v111 = vld [vmem:[%s3 + $0x20] sm:$0xf]
  %v112 = vld [vmem:[%s3 + $0x24] sm:$0xf]
  %v113 = vld [vmem:[%s4] sm:$0xf]
  %v114 = vld [vmem:[%s4 + $0x4] sm:$0xf]
  %v115 = vld [vmem:[%s4 + $0x8] sm:$0xf]
  %v116 = vld [vmem:[%s4 + $0xc] sm:$0xf]
  %v117 = vld [vmem:[%s4 + $0x10] sm:$0xf]
  %v123 = vunpack.c.l.b16 %v113
  %v124 = vunpack.c.l.b16 %v114
  %v125 = vunpack.c.l.b16 %v115
  %v126 = vunpack.c.l.b16 %v116
  %v127 = vunpack.c.l.b16 %v117
  %v128 = vpack.c.b16 %v124, %v123
  %v129 = vpack.c.b16 %v126, %v125
  %v130 = vpack.c.b16 %v127, %v127
  %v134 = vsel %vm57, %v130, 0
  %136 = vmatprep.subr.bf16.mxu0 0
  %137 = vmatpush1.bf16.msra.mxu0 0
  %138 = vmatprep.subr.bf16.mxu0 0
  %139 = vmatpush1.bf16.msra.mxu0 0
  %140 = vmatprep.subr.bf16.mxu0 0
  %141 = vmatpush1.bf16.msra.mxu0 0
  %142 = vmatprep.subr.bf16.mxu0 0
  %143 = vmatpush1.bf16.msra.mxu0 0
  %144 = vmatprep.subr.bf16.mxu0 0
  %145 = vmatpush1.bf16.msra.mxu0 0
  %146 = vmatprep.subr.bf16.mxu0 0
  %147 = vmatpush1.bf16.msra.mxu0 %v134
  %148 = vmatprep.subr.bf16.mxu0 0
  %149 = vmatpush1.bf16.msra.mxu0 %v129
  %150 = vmatprep.subr.bf16.mxu0 0
  %151 = vmatpush1.bf16.msra.mxu0 %v128
  %152 = vmatprep.subr.bf16.mxu0 0
  %153 = vmatpush2.bf16.msra.mxu0 0
  %154 = vmatprep.subr.bf16.mxu0 0
  %155 = vmatpush2.bf16.msra.mxu0 0
  %156 = vmatprep.subr.bf16.mxu0 0
  %157 = vmatpush2.bf16.msra.mxu0 0
  %158 = vmatprep.subr.bf16.mxu0 0
  %159 = vmatpush2.bf16.msra.mxu0 0
  %160 = vmatprep.subr.bf16.mxu0 0
  %161 = vmatpush2.bf16.msra.mxu0 0
  %162 = vmatprep.subr.bf16.mxu0 0
  %163 = vmatpush2.bf16.msra.mxu0 0
  %164 = vmatprep.subr.bf16.mxu0 0
  %165 = vmatpush2.bf16.msra.mxu0 0
  %166 = vmatprep.subr.bf16.mxu0 0
  %167 = vmatpush2.bf16.msra.mxu0 0
  %168 = vmatprep.mubr.bf16.mxu0 0
  %169 = vmatmul.mubr.bf16.gmra.mxu0 %v55
  %v170 = vpop.f32.mrf.mxu0
  %v171 = vadd.f32 0.0, %v170
  %v172 = vpop.f32.mrf.mxu0
  %v173 = vpop.f32.mrf.mxu0
  %v174 = vpop.f32.mrf.mxu0
  %175 = vdwg.mxu0
  %v186 = vunpack.c.l.b16 %v103
  %v187 = vunpack.c.l.b16 %v104
  %v188 = vunpack.c.l.b16 %v105
  %v189 = vunpack.c.l.b16 %v106
  %v190 = vunpack.c.l.b16 %v107
  %v191 = vunpack.c.l.b16 %v108
  %v192 = vunpack.c.l.b16 %v109
  %v193 = vunpack.c.l.b16 %v110
  %v194 = vunpack.c.l.b16 %v111
  %v195 = vunpack.c.l.b16 %v112
  %v196 = vpack.c.b16 %v187, %v186
  %v197 = vpack.c.b16 %v189, %v188
  %v198 = vpack.c.b16 %v191, %v190
  %v199 = vpack.c.b16 %v193, %v192
  %v200 = vpack.c.b16 %v195, %v194
  %vm206 = vcmask 654336
  %v208 = vsel %vm206, %v102, 0
  %210 = vmatprep.subr.bf16.mxu0 0
  %211 = vmatpush1.bf16.msra.mxu0 0
  %212 = vmatprep.subr.bf16.mxu0 0
  %213 = vmatpush1.bf16.msra.mxu0 0
  %214 = vmatprep.subr.bf16.mxu0 0
  %215 = vmatpush1.bf16.msra.mxu0 0
  %216 = vmatprep.subr.bf16.mxu0 0
  %217 = vmatpush1.bf16.msra.mxu0 %v200
  %218 = vmatprep.subr.bf16.mxu0 0
  %219 = vmatpush1.bf16.msra.mxu0 %v199
  %220 = vmatprep.subr.bf16.mxu0 0
  %221 = vmatpush1.bf16.msra.mxu0 %v198
  %222 = vmatprep.subr.bf16.mxu0 0
  %223 = vmatpush1.bf16.msra.mxu0 %v197
  %224 = vmatprep.subr.bf16.mxu0 0
  %225 = vmatpush1.bf16.msra.mxu0 %v196
  %226 = vmatprep.subr.bf16.mxu0 0
  %227 = vmatpush2.bf16.msra.mxu0 0
  %228 = vmatprep.subr.bf16.mxu0 0
  %229 = vmatpush2.bf16.msra.mxu0 0
  %230 = vmatprep.subr.bf16.mxu0 0
  %231 = vmatpush2.bf16.msra.mxu0 0
  %232 = vmatprep.subr.bf16.mxu0 0
  %233 = vmatpush2.bf16.msra.mxu0 0
  %234 = vmatprep.subr.bf16.mxu0 0
  %235 = vmatpush2.bf16.msra.mxu0 0
  %236 = vmatprep.subr.bf16.mxu0 0
  %237 = vmatpush2.bf16.msra.mxu0 0
  %238 = vmatprep.subr.bf16.mxu0 0
  %239 = vmatpush2.bf16.msra.mxu0 0
  %240 = vmatprep.subr.bf16.mxu0 0
  %241 = vmatpush2.bf16.msra.mxu0 0
  %242 = vmatprep.mubr.bf16.mxu0 0
  %243 = vmatmul.mubr.bf16.gmra.mxu0 %v208
  %v244 = vpop.f32.mrf.mxu0
  %v245 = vadd.f32 %v171, %v244
  %v246 = vpop.f32.mrf.mxu0
  %v247 = vpop.f32.mrf.mxu0
  %v248 = vpop.f32.mrf.mxu0
  %249 = vdwg.mxu0
  %v250 = vld [vmem:[%s5] sm:$0x1]
  %v252 = vlaneseq
  %v253 = vshrl.u32 %v252, 7
  %v254 = vsub.s32 0, %v253
  %v255 = vrot.slane %v250, %v254
  %v257 = vadd.f32 %v245, %v255
  %v258 = vmax.f32 %v257, 0.0
  %vm259 = vcmask 324608
  %260 = vst.msk [vmem:[%s6] sm:$0x3f] %vm259, %v258
  // Predicated region
  $region26: #{encoder_forward.5} parent=0 // pred_check
    _
  $region27: #{encoder_forward.5} parent=0 // pred_check_branch
    %262 = sbr.rel (0) target = $region29
  $region28: #{encoder_forward.5} parent=0 // pred_region
    _
  $region29: #{encoder_forward.5} parent=0 // pred_fallthru
    _
  // Predicated region
  $region30: #{encoder_forward.5} parent=0 // pred_check
    _
  $region31: #{encoder_forward.5} parent=0 // pred_check_branch
    %264 = sbr.rel (0) target = $region33
  $region32: #{encoder_forward.5} parent=0 // pred_region
    _
  $region33: #{encoder_forward.5} parent=0 // pred_fallthru
    _

// kernel: encoder_forward.4
$region0: #{encoder_forward.4}
  #allocation0 [shape = 'u32[]', space=smem, size = 0x4, offset = 0x4, fixed_abs, tag = 'smem constant byte address 0x4 - core index']
  #allocation1 [shape = 'u32[144,128]{1,0:T(1,128)}', space=vmem, size = 0x12000, scoped, tag = 'internal scratch']
  %s0 = inlined_call_operand.vmem [shape: f32[12,40], index: 0, kind: input, shape index: {}]
  %s1 = inlined_call_operand.vmem [shape: bf16[40,40], index: 1, kind: input, shape index: {}]
  %s2 = inlined_call_operand.vmem [shape: f32[1,40], index: 2, kind: input, shape index: {}]
  %s3 = inlined_call_operand.vmem [shape: bf16[40,20], index: 3, kind: input, shape index: {}]
  %s4 = inlined_call_operand.vmem [shape: bf16[40,20], index: 4, kind: input, shape index: {}]
  %s5 = inlined_call_operand.vmem [shape: f32[1,20], index: 5, kind: input, shape index: {}]
  %s6 = inlined_call_operand.vmem [shape: f32[12,20], index: 6, kind: output, shape index: {}]
  %s7 = sld [smem:[#allocation0]]
  $region34: #{encoder_forward.4} parent=0
    _
  %s9 = ssub.s32 1, %s7
  %s10 = scalar_select 0, %s9, %s7
  // Predicated region
  $region2: #{encoder_forward.4} parent=0 // pred_check
    _
  $region3: #{encoder_forward.4} parent=0 // pred_check_branch
    %12 = sbr.rel (0) target = $region5
  $region4: #{encoder_forward.4} parent=0 // pred_region
    _
  $region5: #{encoder_forward.4} parent=0 // pred_fallthru
    _
  // Predicated region
  $region6: #{encoder_forward.4} parent=0 // pred_check
    _
  $region7: #{encoder_forward.4} parent=0 // pred_check_branch
    %14 = sbr.rel (0) target = $region9
  $region8: #{encoder_forward.4} parent=0 // pred_region
    _
  $region9: #{encoder_forward.4} parent=0 // pred_fallthru
    _
  // Predicated region
  $region10: #{encoder_forward.4} parent=0 // pred_check
    _
  $region11: #{encoder_forward.4} parent=0 // pred_check_branch
    %16 = sbr.rel (0) target = $region13
  $region12: #{encoder_forward.4} parent=0 // pred_region
    _
  $region13: #{encoder_forward.4} parent=0 // pred_fallthru
    _
  // Predicated region
  $region14: #{encoder_forward.4} parent=0 // pred_check
    _
  $region15: #{encoder_forward.4} parent=0 // pred_check_branch
    %18 = sbr.rel (0) target = $region17
  $region16: #{encoder_forward.4} parent=0 // pred_region
    _
  $region17: #{encoder_forward.4} parent=0 // pred_fallthru
    _
  // Predicated region
  $region18: #{encoder_forward.4} parent=0 // pred_check
    _
  $region19: #{encoder_forward.4} parent=0 // pred_check_branch
    %20 = sbr.rel (0) target = $region21
  $region20: #{encoder_forward.4} parent=0 // pred_region
    _
  $region21: #{encoder_forward.4} parent=0 // pred_fallthru
    _
  // Predicated region
  $region22: #{encoder_forward.4} parent=0 // pred_check
    _
  $region23: #{encoder_forward.4} parent=0 // pred_check_branch
    %22 = sbr.rel (0) target = $region25
  $region24: #{encoder_forward.4} parent=0 // pred_region
    _
  $region25: #{encoder_forward.4} parent=0 // pred_fallthru
    _
  %v24 = vld [vmem:[%s0] sm:$0xff]
  %v25 = vld [vmem:[%s0 + $0x8] sm:$0xf]
  %v26 = vpack.c.bf16 %v25, %v24
  %v27 = vld [vmem:[%s1] sm:$0xf]
  %v28 = vld [vmem:[%s1 + $0x4] sm:$0xf]
  %v29 = vld [vmem:[%s1 + $0x8] sm:$0xf]
  %v30 = vld [vmem:[%s1 + $0xc] sm:$0xf]
  %v31 = vld [vmem:[%s1 + $0x10] sm:$0xf]
  %v32 = vld [vmem:[%s2] sm:$0x1]
  %v34 = vlaneseq
  %v35 = vshrl.u32 %v34, 7
  %v36 = vsub.s32 0, %v35
  %v37 = vrot.slane %v32, %v36
  %v44 = vunpack.c.l.b16 %v27
  %v45 = vunpack.c.l.b16 %v28
  %v46 = vunpack.c.l.b16 %v29
  %v47 = vunpack.c.l.b16 %v30
  %v48 = vunpack.c.l.b16 %v31
  %v49 = vpack.c.b16 %v45, %v44
  %v50 = vpack.c.b16 %v47, %v46
  %v51 = vpack.c.b16 %v48, %v48
  %vm54 = vcmask 326656
  %v56 = vsel %vm54, %v26, 0
  %vm58 = vcmask 1043456
  %v60 = vsel %vm58, %v51, 0
  %62 = vmatprep.subr.bf16.mxu0 0
  %63 = vmatpush1.bf16.msra.mxu0 0
  %64 = vmatprep.subr.bf16.mxu0 0
  %65 = vmatpush1.bf16.msra.mxu0 0
  %66 = vmatprep.subr.bf16.mxu0 0
  %67 = vmatpush1.bf16.msra.mxu0 0
  %68 = vmatprep.subr.bf16.mxu0 0
  %69 = vmatpush1.bf16.msra.mxu0 0
  %70 = vmatprep.subr.bf16.mxu0 0
  %71 = vmatpush1.bf16.msra.mxu0 0
  %72 = vmatprep.subr.bf16.mxu0 0
  %73 = vmatpush1.bf16.msra.mxu0 %v60
  %74 = vmatprep.subr.bf16.mxu0 0
  %75 = vmatpush1.bf16.msra.mxu0 %v50
  %76 = vmatprep.subr.bf16.mxu0 0
  %77 = vmatpush1.bf16.msra.mxu0 %v49
  %78 = vmatprep.subr.bf16.mxu0 0
  %79 = vmatpush2.bf16.msra.mxu0 0
  %80 = vmatprep.subr.bf16.mxu0 0
  %81 = vmatpush2.bf16.msra.mxu0 0
  %82 = vmatprep.subr.bf16.mxu0 0
  %83 = vmatpush2.bf16.msra.mxu0 0
  %84 = vmatprep.subr.bf16.mxu0 0
  %85 = vmatpush2.bf16.msra.mxu0 0
  %86 = vmatprep.subr.bf16.mxu0 0
  %87 = vmatpush2.bf16.msra.mxu0 0
  %88 = vmatprep.subr.bf16.mxu0 0
  %89 = vmatpush2.bf16.msra.mxu0 0
  %90 = vmatprep.subr.bf16.mxu0 0
  %91 = vmatpush2.bf16.msra.mxu0 0
  %92 = vmatprep.subr.bf16.mxu0 0
  %93 = vmatpush2.bf16.msra.mxu0 0
  %94 = vmatprep.mubr.bf16.mxu0 0
  %95 = vmatmul.mubr.bf16.gmra.mxu0 %v56
  %v96 = vpop.f32.mrf.mxu0
  %v97 = vadd.f32 %v37, %v96
  %v98 = vpop.f32.mrf.mxu0
  %v99 = vpop.f32.mrf.mxu0
  %v100 = vadd.f32 %v37, %v99
  %v101 = vpop.f32.mrf.mxu0
  %102 = vdwg.mxu0
  %v103 = vmax.f32 %v97, 0.0
  %v104 = vmax.f32 %v100, 0.0
  %v105 = vpack.c.bf16 %v104, %v103
  %v106 = vld [vmem:[%s3] sm:$0xf]
  %v107 = vld [vmem:[%s3 + $0x4] sm:$0xf]
  %v108 = vld [vmem:[%s3 + $0x8] sm:$0xf]
  %v109 = vld [vmem:[%s3 + $0xc] sm:$0xf]
  %v110 = vld [vmem:[%s3 + $0x10] sm:$0xf]
  %v111 = vld [vmem:[%s4] sm:$0xf]
  %v112 = vld [vmem:[%s4 + $0x4] sm:$0xf]
  %v113 = vld [vmem:[%s4 + $0x8] sm:$0xf]
  %v114 = vld [vmem:[%s4 + $0xc] sm:$0xf]
  %v115 = vld [vmem:[%s4 + $0x10] sm:$0xf]
  %v121 = vunpack.c.l.b16 %v111
  %v122 = vunpack.c.l.b16 %v112
  %v123 = vunpack.c.l.b16 %v113
  %v124 = vunpack.c.l.b16 %v114
  %v125 = vunpack.c.l.b16 %v115
  %v126 = vpack.c.b16 %v122, %v121
  %v127 = vpack.c.b16 %v124, %v123
  %v128 = vpack.c.b16 %v125, %v125
  %v132 = vsel %vm58, %v128, 0
  %134 = vmatprep.subr.bf16.mxu0 0
  %135 = vmatpush1.bf16.msra.mxu0 0
  %136 = vmatprep.subr.bf16.mxu0 0
  %137 = vmatpush1.bf16.msra.mxu0 0
  %138 = vmatprep.subr.bf16.mxu0 0
  %139 = vmatpush1.bf16.msra.mxu0 0
  %140 = vmatprep.subr.bf16.mxu0 0
  %141 = vmatpush1.bf16.msra.mxu0 0
  %142 = vmatprep.subr.bf16.mxu0 0
  %143 = vmatpush1.bf16.msra.mxu0 0
  %144 = vmatprep.subr.bf16.mxu0 0
  %145 = vmatpush1.bf16.msra.mxu0 %v132
  %146 = vmatprep.subr.bf16.mxu0 0
  %147 = vmatpush1.bf16.msra.mxu0 %v127
  %148 = vmatprep.subr.bf16.mxu0 0
  %149 = vmatpush1.bf16.msra.mxu0 %v126
  %150 = vmatprep.subr.bf16.mxu0 0
  %151 = vmatpush2.bf16.msra.mxu0 0
  %152 = vmatprep.subr.bf16.mxu0 0
  %153 = vmatpush2.bf16.msra.mxu0 0
  %154 = vmatprep.subr.bf16.mxu0 0
  %155 = vmatpush2.bf16.msra.mxu0 0
  %156 = vmatprep.subr.bf16.mxu0 0
  %157 = vmatpush2.bf16.msra.mxu0 0
  %158 = vmatprep.subr.bf16.mxu0 0
  %159 = vmatpush2.bf16.msra.mxu0 0
  %160 = vmatprep.subr.bf16.mxu0 0
  %161 = vmatpush2.bf16.msra.mxu0 0
  %162 = vmatprep.subr.bf16.mxu0 0
  %163 = vmatpush2.bf16.msra.mxu0 0
  %164 = vmatprep.subr.bf16.mxu0 0
  %165 = vmatpush2.bf16.msra.mxu0 0
  %166 = vmatprep.mubr.bf16.mxu0 0
  %167 = vmatmul.mubr.bf16.gmra.mxu0 %v56
  %v168 = vpop.f32.mrf.mxu0
  %v169 = vadd.f32 0.0, %v168
  %v170 = vpop.f32.mrf.mxu0
  %v171 = vpop.f32.mrf.mxu0
  %v172 = vadd.f32 0.0, %v171
  %v173 = vpop.f32.mrf.mxu0
  %174 = vdwg.mxu0
  %v180 = vunpack.c.l.b16 %v106
  %v181 = vunpack.c.l.b16 %v107
  %v182 = vunpack.c.l.b16 %v108
  %v183 = vunpack.c.l.b16 %v109
  %v184 = vunpack.c.l.b16 %v110
  %v185 = vpack.c.b16 %v181, %v180
  %v186 = vpack.c.b16 %v183, %v182
  %v187 = vpack.c.b16 %v184, %v184
  %v191 = vsel %vm54, %v105, 0
  %v194 = vsel %vm58, %v187, 0
  %196 = vmatprep.subr.bf16.mxu0 0
  %197 = vmatpush1.bf16.msra.mxu0 0
  %198 = vmatprep.subr.bf16.mxu0 0
  %199 = vmatpush1.bf16.msra.mxu0 0
  %200 = vmatprep.subr.bf16.mxu0 0
  %201 = vmatpush1.bf16.msra.mxu0 0
  %202 = vmatprep.subr.bf16.mxu0 0
  %203 = vmatpush1.bf16.msra.mxu0 0
  %204 = vmatprep.subr.bf16.mxu0 0
  %205 = vmatpush1.bf16.msra.mxu0 0
  %206 = vmatprep.subr.bf16.mxu0 0
  %207 = vmatpush1.bf16.msra.mxu0 %v194
  %208 = vmatprep.subr.bf16.mxu0 0
  %209 = vmatpush1.bf16.msra.mxu0 %v186
  %210 = vmatprep.subr.bf16.mxu0 0
  %211 = vmatpush1.bf16.msra.mxu0 %v185
  %212 = vmatprep.subr.bf16.mxu0 0
  %213 = vmatpush2.bf16.msra.mxu0 0
  %214 = vmatprep.subr.bf16.mxu0 0
  %215 = vmatpush2.bf16.msra.mxu0 0
  %216 = vmatprep.subr.bf16.mxu0 0
  %217 = vmatpush2.bf16.msra.mxu0 0
  %218 = vmatprep.subr.bf16.mxu0 0
  %219 = vmatpush2.bf16.msra.mxu0 0
  %220 = vmatprep.subr.bf16.mxu0 0
  %221 = vmatpush2.bf16.msra.mxu0 0
  %222 = vmatprep.subr.bf16.mxu0 0
  %223 = vmatpush2.bf16.msra.mxu0 0
  %224 = vmatprep.subr.bf16.mxu0 0
  %225 = vmatpush2.bf16.msra.mxu0 0
  %226 = vmatprep.subr.bf16.mxu0 0
  %227 = vmatpush2.bf16.msra.mxu0 0
  %228 = vmatprep.mubr.bf16.mxu0 0
  %229 = vmatmul.mubr.bf16.gmra.mxu0 %v191
  %v230 = vpop.f32.mrf.mxu0
  %v231 = vadd.f32 %v169, %v230
  %v232 = vpop.f32.mrf.mxu0
  %v233 = vpop.f32.mrf.mxu0
  %v234 = vadd.f32 %v172, %v233
  %v235 = vpop.f32.mrf.mxu0
  %236 = vdwg.mxu0
  %v237 = vld [vmem:[%s5] sm:$0x1]
  %v239 = vlaneseq
  %v240 = vshrl.u32 %v239, 7
  %v241 = vsub.s32 0, %v240
  %v242 = vrot.slane %v237, %v241
  %v244 = vadd.f32 %v231, %v242
  %v245 = vadd.f32 %v234, %v242
  %v246 = vmax.f32 %v244, 0.0
  %v247 = vmax.f32 %v245, 0.0
  %vm248 = vcmask 162816
  %249 = vst.msk [vmem:[%s6] sm:$0xff] %vm248, %v246
  %vm250 = vcmask 158720
  %251 = vst.msk [vmem:[%s6 + $0x8] sm:$0xf] %vm250, %v247
  // Predicated region
  $region26: #{encoder_forward.4} parent=0 // pred_check
    _
  $region27: #{encoder_forward.4} parent=0 // pred_check_branch
    %253 = sbr.rel (0) target = $region29
  $region28: #{encoder_forward.4} parent=0 // pred_region
    _
  $region29: #{encoder_forward.4} parent=0 // pred_fallthru
    _
  // Predicated region
  $region30: #{encoder_forward.4} parent=0 // pred_check
    _
  $region31: #{encoder_forward.4} parent=0 // pred_check_branch
    %255 = sbr.rel (0) target = $region33
  $region32: #{encoder_forward.4} parent=0 // pred_region
    _
  $region33: #{encoder_forward.4} parent=0 // pred_fallthru
    _

// kernel: encoder_forward.7
$region0: #{encoder_forward.7}
  #allocation0 [shape = 'u32[]', space=smem, size = 0x4, offset = 0x4, fixed_abs, tag = 'smem constant byte address 0x4 - core index']
  #allocation1 [shape = 'u32[144,128]{1,0:T(1,128)}', space=vmem, size = 0x12000, scoped, tag = 'internal scratch']
  %s0 = inlined_call_operand.vmem [shape: f32[2,80], index: 0, kind: input, shape index: {}]
  %s1 = inlined_call_operand.vmem [shape: bf16[80,16], index: 1, kind: input, shape index: {}]
  %s2 = inlined_call_operand.vmem [shape: f32[1,16], index: 2, kind: input, shape index: {}]
  %s3 = inlined_call_operand.vmem [shape: f32[2,16], index: 3, kind: output, shape index: {}]
  %s4 = sld [smem:[#allocation0]]
  $region22: #{encoder_forward.7} parent=0
    _
  %s6 = ssub.s32 1, %s4
  %s7 = scalar_select 0, %s6, %s4
  // Predicated region
  $region2: #{encoder_forward.7} parent=0 // pred_check
    _
  $region3: #{encoder_forward.7} parent=0 // pred_check_branch
    %9 = sbr.rel (0) target = $region5
  $region4: #{encoder_forward.7} parent=0 // pred_region
    _
  $region5: #{encoder_forward.7} parent=0 // pred_fallthru
    _
  // Predicated region
  $region6: #{encoder_forward.7} parent=0 // pred_check
    _
  $region7: #{encoder_forward.7} parent=0 // pred_check_branch
    %11 = sbr.rel (0) target = $region9
  $region8: #{encoder_forward.7} parent=0 // pred_region
    _
  $region9: #{encoder_forward.7} parent=0 // pred_fallthru
    _
  // Predicated region
  $region10: #{encoder_forward.7} parent=0 // pred_check
    _
  $region11: #{encoder_forward.7} parent=0 // pred_check_branch
    %13 = sbr.rel (0) target = $region13
  $region12: #{encoder_forward.7} parent=0 // pred_region
    _
  $region13: #{encoder_forward.7} parent=0 // pred_fallthru
    _
  %v15 = vld [vmem:[%s0] sm:$0x3]
  %v16 = vpack.c.bf16 %v15, %v15
  %v17 = vld [vmem:[%s1] sm:$0xf]
  %v18 = vld [vmem:[%s1 + $0x4] sm:$0xf]
  %v19 = vld [vmem:[%s1 + $0x8] sm:$0xf]
  %v20 = vld [vmem:[%s1 + $0xc] sm:$0xf]
  %v21 = vld [vmem:[%s1 + $0x10] sm:$0xf]
  %v22 = vld [vmem:[%s1 + $0x14] sm:$0xf]
  %v23 = vld [vmem:[%s1 + $0x18] sm:$0xf]
  %v24 = vld [vmem:[%s1 + $0x1c] sm:$0xf]
  %v25 = vld [vmem:[%s1 + $0x20] sm:$0xf]
  %v26 = vld [vmem:[%s1 + $0x24] sm:$0xf]
  %v27 = vld [vmem:[%s2] sm:$0x1]
  %v29 = vlaneseq
  %v30 = vshrl.u32 %v29, 7
  %v31 = vsub.s32 0, %v30
  %v32 = vrot.slane %v27, %v31
  %v44 = vunpack.c.l.b16 %v17
  %v45 = vunpack.c.l.b16 %v18
  %v46 = vunpack.c.l.b16 %v19
  %v47 = vunpack.c.l.b16 %v20
  %v48 = vunpack.c.l.b16 %v21
  %v49 = vunpack.c.l.b16 %v22
  %v50 = vunpack.c.l.b16 %v23
  %v51 = vunpack.c.l.b16 %v24
  %v52 = vunpack.c.l.b16 %v25
  %v53 = vunpack.c.l.b16 %v26
  %v54 = vpack.c.b16 %v45, %v44
  %v55 = vpack.c.b16 %v47, %v46
  %v56 = vpack.c.b16 %v49, %v48
  %v57 = vpack.c.b16 %v51, %v50
  %v58 = vpack.c.b16 %v53, %v52
  %vm64 = vcmask 654336
  %v66 = vsel %vm64, %v16, 0
  %68 = vmatprep.subr.bf16.mxu0 0
  %69 = vmatpush1.bf16.msra.mxu0 0
  %70 = vmatprep.subr.bf16.mxu0 0
  %71 = vmatpush1.bf16.msra.mxu0 0
  %72 = vmatprep.subr.bf16.mxu0 0
  %73 = vmatpush1.bf16.msra.mxu0 0
  %74 = vmatprep.subr.bf16.mxu0 0
  %75 = vmatpush1.bf16.msra.mxu0 %v58
  %76 = vmatprep.subr.bf16.mxu0 0
  %77 = vmatpush1.bf16.msra.mxu0 %v57
  %78 = vmatprep.subr.bf16.mxu0 0
  %79 = vmatpush1.bf16.msra.mxu0 %v56
  %80 = vmatprep.subr.bf16.mxu0 0
  %81 = vmatpush1.bf16.msra.mxu0 %v55
  %82 = vmatprep.subr.bf16.mxu0 0
  %83 = vmatpush1.bf16.msra.mxu0 %v54
  %84 = vmatprep.subr.bf16.mxu0 0
  %85 = vmatpush2.bf16.msra.mxu0 0
  %86 = vmatprep.subr.bf16.mxu0 0
  %87 = vmatpush2.bf16.msra.mxu0 0
  %88 = vmatprep.subr.bf16.mxu0 0
  %89 = vmatpush2.bf16.msra.mxu0 0
  %90 = vmatprep.subr.bf16.mxu0 0
  %91 = vmatpush2.bf16.msra.mxu0 0
  %92 = vmatprep.subr.bf16.mxu0 0
  %93 = vmatpush2.bf16.msra.mxu0 0
  %94 = vmatprep.subr.bf16.mxu0 0
  %95 = vmatpush2.bf16.msra.mxu0 0
  %96 = vmatprep.subr.bf16.mxu0 0
  %97 = vmatpush2.bf16.msra.mxu0 0
  %98 = vmatprep.subr.bf16.mxu0 0
  %99 = vmatpush2.bf16.msra.mxu0 0
  %100 = vmatprep.mubr.bf16.mxu0 0
  %101 = vmatmul.mubr.bf16.gmra.mxu0 %v66
  %v102 = vpop.f32.mrf.mxu0
  %v103 = vadd.f32 %v32, %v102
  %v104 = vpop.f32.mrf.mxu0
  %v105 = vpop.f32.mrf.mxu0
  %v106 = vpop.f32.mrf.mxu0
  %107 = vdwg.mxu0
  %vm108 = vcmask 123904
  %109 = vst.msk [vmem:[%s3] sm:$0x3] %vm108, %v103
  // Predicated region
  $region14: #{encoder_forward.7} parent=0 // pred_check
    _
  $region15: #{encoder_forward.7} parent=0 // pred_check_branch
    %111 = sbr.rel (0) target = $region17
  $region16: #{encoder_forward.7} parent=0 // pred_region
    _
  $region17: #{encoder_forward.7} parent=0 // pred_fallthru
    _
  // Predicated region
  $region18: #{encoder_forward.7} parent=0 // pred_check
    _
  $region19: #{encoder_forward.7} parent=0 // pred_check_branch
    %113 = sbr.rel (0) target = $region21
  $region20: #{encoder_forward.7} parent=0 // pred_region
    _
  $region21: #{encoder_forward.7} parent=0 // pred_fallthru
    _

// kernel: encoder_forward.6
$region0: #{encoder_forward.6}
  #allocation0 [shape = 'u32[]', space=smem, size = 0x4, offset = 0x4, fixed_abs, tag = 'smem constant byte address 0x4 - core index']
  #allocation1 [shape = 'u32[144,128]{1,0:T(1,128)}', space=vmem, size = 0x12000, scoped, tag = 'internal scratch']
  %s0 = inlined_call_operand.vmem [shape: f32[2,120], index: 0, kind: input, shape index: {}]
  %s1 = inlined_call_operand.vmem [shape: bf16[120,240], index: 1, kind: input, shape index: {}]
  %s2 = inlined_call_operand.vmem [shape: f32[1,240], index: 2, kind: input, shape index: {}]
  %s3 = inlined_call_operand.vmem [shape: bf16[240,80], index: 3, kind: input, shape index: {}]
  %s4 = inlined_call_operand.vmem [shape: bf16[120,80], index: 4, kind: input, shape index: {}]
  %s5 = inlined_call_operand.vmem [shape: f32[1,80], index: 5, kind: input, shape index: {}]
  %s6 = inlined_call_operand.vmem [shape: f32[2,80], index: 6, kind: output, shape index: {}]
  %s7 = sld [smem:[#allocation0]]
  $region34: #{encoder_forward.6} parent=0
    _
  %s9 = ssub.s32 1, %s7
  %s10 = scalar_select 0, %s9, %s7
  // Predicated region
  $region2: #{encoder_forward.6} parent=0 // pred_check
    _
  $region3: #{encoder_forward.6} parent=0 // pred_check_branch
    %12 = sbr.rel (0) target = $region5
  $region4: #{encoder_forward.6} parent=0 // pred_region
    _
  $region5: #{encoder_forward.6} parent=0 // pred_fallthru
    _
  // Predicated region
  $region6: #{encoder_forward.6} parent=0 // pred_check
    _
  $region7: #{encoder_forward.6} parent=0 // pred_check_branch
    %14 = sbr.rel (0) target = $region9
  $region8: #{encoder_forward.6} parent=0 // pred_region
    _
  $region9: #{encoder_forward.6} parent=0 // pred_fallthru
    _
  // Predicated region
  $region10: #{encoder_forward.6} parent=0 // pred_check
    _
  $region11: #{encoder_forward.6} parent=0 // pred_check_branch
    %16 = sbr.rel (0) target = $region13
  $region12: #{encoder_forward.6} parent=0 // pred_region
    _
  $region13: #{encoder_forward.6} parent=0 // pred_fallthru
    _
  // Predicated region
  $region14: #{encoder_forward.6} parent=0 // pred_check
    _
  $region15: #{encoder_forward.6} parent=0 // pred_check_branch
    %18 = sbr.rel (0) target = $region17
  $region16: #{encoder_forward.6} parent=0 // pred_region
    _
  $region17: #{encoder_forward.6} parent=0 // pred_fallthru
    _
  // Predicated region
  $region18: #{encoder_forward.6} parent=0 // pred_check
    _
  $region19: #{encoder_forward.6} parent=0 // pred_check_branch
    %20 = sbr.rel (0) target = $region21
  $region20: #{encoder_forward.6} parent=0 // pred_region
    _
  $region21: #{encoder_forward.6} parent=0 // pred_fallthru
    _
  // Predicated region
  $region22: #{encoder_forward.6} parent=0 // pred_check
    _
  $region23: #{encoder_forward.6} parent=0 // pred_check_branch
    %22 = sbr.rel (0) target = $region25
  $region24: #{encoder_forward.6} parent=0 // pred_region
    _
  $region25: #{encoder_forward.6} parent=0 // pred_fallthru
    _
  %v24 = vld [vmem:[%s0] sm:$0x3]
  %v25 = vpack.c.bf16 %v24, %v24
  %v26 = vld [vmem:[%s1] sm:$0xff]
  %v27 = vld [vmem:[%s1 + $0x8] sm:$0xff]
  %v28 = vld [vmem:[%s1 + $0x10] sm:$0xff]
  %v29 = vld [vmem:[%s1 + $0x18] sm:$0xff]
  %v30 = vld [vmem:[%s1 + $0x20] sm:$0xff]
  %v31 = vld [vmem:[%s1 + $0x28] sm:$0xff]
  %v32 = vld [vmem:[%s1 + $0x30] sm:$0xff]
  %v33 = vld [vmem:[%s1 + $0x38] sm:$0xff]
  %v34 = vld [vmem:[%s1 + $0x40] sm:$0xff]
  %v35 = vld [vmem:[%s1 + $0x48] sm:$0xff]
  %v36 = vld [vmem:[%s1 + $0x50] sm:$0xff]
  %v37 = vld [vmem:[%s1 + $0x58] sm:$0xff]
  %v38 = vld [vmem:[%s1 + $0x60] sm:$0xff]
  %v39 = vld [vmem:[%s1 + $0x68] sm:$0xff]
  %v40 = vld [vmem:[%s1 + $0x70] sm:$0xff]
  %v41 = vld [vmem:[%s2] sm:$0x3]
  %v43 = vlaneseq
  %v44 = vshrl.u32 %v43, 7
  %v45 = vsub.s32 0, %v44
  %v46 = vrot.slane %v41, %v45
  %v47 = vlaneseq
  %v48 = vshrl.u32 %v47, 7
  %v49 = vsub.s32 1, %v48
  %v50 = vrot.slane %v41, %v49
  %v68 = vunpack.c.l.b16 %v26
  %v69 = vunpack.c.h.b16 %v26
  %v70 = vunpack.c.l.b16 %v27
  %v71 = vunpack.c.h.b16 %v27
  %v72 = vunpack.c.l.b16 %v28
  %v73 = vunpack.c.h.b16 %v28
  %v74 = vunpack.c.l.b16 %v29
  %v75 = vunpack.c.h.b16 %v29
  %v76 = vunpack.c.l.b16 %v30
  %v77 = vunpack.c.h.b16 %v30
  %v78 = vunpack.c.l.b16 %v31
  %v79 = vunpack.c.h.b16 %v31
  %v80 = vunpack.c.l.b16 %v32
  %v81 = vunpack.c.h.b16 %v32
  %v82 = vunpack.c.l.b16 %v33
  %v83 = vunpack.c.h.b16 %v33
  %v84 = vunpack.c.l.b16 %v34
  %v85 = vunpack.c.h.b16 %v34
  %v86 = vunpack.c.l.b16 %v35
  %v87 = vunpack.c.h.b16 %v35
  %v88 = vunpack.c.l.b16 %v36
  %v89 = vunpack.c.h.b16 %v36
  %v90 = vunpack.c.l.b16 %v37
  %v91 = vunpack.c.h.b16 %v37
  %v92 = vunpack.c.l.b16 %v38
  %v93 = vunpack.c.h.b16 %v38
  %v94 = vunpack.c.l.b16 %v39
  %v95 = vunpack.c.h.b16 %v39
  %v96 = vunpack.c.l.b16 %v40
  %v97 = vunpack.c.h.b16 %v40
  %v98 = vpack.c.b16 %v70, %v68
  %v99 = vpack.c.b16 %v71, %v69
  %v100 = vpack.c.b16 %v74, %v72
  %v101 = vpack.c.b16 %v75, %v73
  %v102 = vpack.c.b16 %v78, %v76
  %v103 = vpack.c.b16 %v79, %v77
  %v104 = vpack.c.b16 %v82, %v80
  %v105 = vpack.c.b16 %v83, %v81
  %v106 = vpack.c.b16 %v86, %v84
  %v107 = vpack.c.b16 %v87, %v85
  %v108 = vpack.c.b16 %v90, %v88
  %v109 = vpack.c.b16 %v91, %v89
  %v110 = vpack.c.b16 %v94, %v92
  %v111 = vpack.c.b16 %v95, %v93
  %v112 = vpack.c.b16 %v96, %v96
  %v113 = vpack.c.b16 %v97, %v97
  %vm128 = vcmask 982016
  %v130 = vsel %vm128, %v25, 0
  %vm132 = vcmask 1043456
  %v134 = vsel %vm132, %v112, 0
  %v137 = vsel %vm132, %v113, 0
  %139 = vmatprep.subr.bf16.mxu0 %v137
  %140 = vmatpush1.bf16.msra.mxu0 %v134
  %141 = vmatprep.subr.bf16.mxu0 %v111
  %142 = vmatpush1.bf16.msra.mxu0 %v110
  %143 = vmatprep.subr.bf16.mxu0 %v109
  %144 = vmatpush1.bf16.msra.mxu0 %v108
  %145 = vmatprep.subr.bf16.mxu0 %v107
  %146 = vmatpush1.bf16.msra.mxu0 %v106
  %147 = vmatprep.subr.bf16.mxu0 %v105
  %148 = vmatpush1.bf16.msra.mxu0 %v104
  %149 = vmatprep.subr.bf16.mxu0 %v103
  %150 = vmatpush1.bf16.msra.mxu0 %v102
  %151 = vmatprep.subr.bf16.mxu0 %v101
  %152 = vmatpush1.bf16.msra.mxu0 %v100
  %153 = vmatprep.subr.bf16.mxu0 %v99
  %154 = vmatpush1.bf16.msra.mxu0 %v98
  %155 = vmatprep.subr.bf16.mxu0 0
  %156 = vmatpush2.bf16.msra.mxu0 0
  %157 = vmatprep.subr.bf16.mxu0 0
  %158 = vmatpush2.bf16.msra.mxu0 0
  %159 = vmatprep.subr.bf16.mxu0 0
  %160 = vmatpush2.bf16.msra.mxu0 0
  %161 = vmatprep.subr.bf16.mxu0 0
  %162 = vmatpush2.bf16.msra.mxu0 0
  %163 = vmatprep.subr.bf16.mxu0 0
  %164 = vmatpush2.bf16.msra.mxu0 0
  %165 = vmatprep.subr.bf16.mxu0 0
  %166 = vmatpush2.bf16.msra.mxu0 0
  %167 = vmatprep.subr.bf16.mxu0 0
  %168 = vmatpush2.bf16.msra.mxu0 0
  %169 = vmatprep.subr.bf16.mxu0 0
  %170 = vmatpush2.bf16.msra.mxu0 0
  %171 = vmatprep.mubr.bf16.mxu0 0
  %172 = vmatmul.mubr.bf16.gmra.mxu0 %v130
  %v173 = vpop.f32.mrf.mxu0
  %v174 = vadd.f32 %v46, %v173
  %v175 = vpop.f32.mrf.mxu0
  %v176 = vadd.f32 %v50, %v175
  %v177 = vpop.f32.mrf.mxu0
  %v178 = vpop.f32.mrf.mxu0
  %179 = vdwg.mxu0
  %v180 = vmax.f32 %v174, 0.0
  %v181 = vmax.f32 %v176, 0.0
  %v182 = vpack.c.bf16 %v180, %v180
  %v183 = vpack.c.bf16 %v181, %v181
  %v184 = vld [vmem:[%s3] sm:$0xf]
  %v185 = vld [vmem:[%s3 + $0x4] sm:$0xf]
  %v186 = vld [vmem:[%s3 + $0x8] sm:$0xf]
  %v187 = vld [vmem:[%s3 + $0xc] sm:$0xf]
  %v188 = vld [vmem:[%s3 + $0x10] sm:$0xf]
  %v189 = vld [vmem:[%s3 + $0x14] sm:$0xf]
  %v190 = vld [vmem:[%s3 + $0x18] sm:$0xf]
  %v191 = vld [vmem:[%s3 + $0x1c] sm:$0xf]
  %v192 = vld [vmem:[%s3 + $0x20] sm:$0xf]
  %v193 = vld [vmem:[%s3 + $0x24] sm:$0xf]
  %v194 = vld [vmem:[%s3 + $0x28] sm:$0xf]
  %v195 = vld [vmem:[%s3 + $0x2c] sm:$0xf]
  %v196 = vld [vmem:[%s3 + $0x30] sm:$0xf]
  %v197 = vld [vmem:[%s3 + $0x34] sm:$0xf]
  %v198 = vld [vmem:[%s3 + $0x38] sm:$0xf]
  %v199 = vld [vmem:[%s3 + $0x3c] sm:$0xf]
  %v200 = vld [vmem:[%s3 + $0x40] sm:$0xf]
  %v201 = vld [vmem:[%s3 + $0x44] sm:$0xf]
  %v202 = vld [vmem:[%s3 + $0x48] sm:$0xf]
  %v203 = vld [vmem:[%s3 + $0x4c] sm:$0xf]
  %v204 = vld [vmem:[%s3 + $0x50] sm:$0xf]
  %v205 = vld [vmem:[%s3 + $0x54] sm:$0xf]
  %v206 = vld [vmem:[%s3 + $0x58] sm:$0xf]
  %v207 = vld [vmem:[%s3 + $0x5c] sm:$0xf]
  %v208 = vld [vmem:[%s3 + $0x60] sm:$0xf]
  %v209 = vld [vmem:[%s3 + $0x64] sm:$0xf]
  %v210 = vld [vmem:[%s3 + $0x68] sm:$0xf]
  %v211 = vld [vmem:[%s3 + $0x6c] sm:$0xf]
  %v212 = vld [vmem:[%s3 + $0x70] sm:$0xf]
  %v213 = vld [vmem:[%s3 + $0x74] sm:$0xf]
  %v214 = vld [vmem:[%s4] sm:$0xf]
  %v215 = vld [vmem:[%s4 + $0x4] sm:$0xf]
  %v216 = vld [vmem:[%s4 + $0x8] sm:$0xf]
  %v217 = vld [vmem:[%s4 + $0xc] sm:$0xf]
  %v218 = vld [vmem:[%s4 + $0x10] sm:$0xf]
  %v219 = vld [vmem:[%s4 + $0x14] sm:$0xf]
  %v220 = vld [vmem:[%s4 + $0x18] sm:$0xf]
  %v221 = vld [vmem:[%s4 + $0x1c] sm:$0xf]
  %v222 = vld [vmem:[%s4 + $0x20] sm:$0xf]
  %v223 = vld [vmem:[%s4 + $0x24] sm:$0xf]
  %v224 = vld [vmem:[%s4 + $0x28] sm:$0xf]
  %v225 = vld [vmem:[%s4 + $0x2c] sm:$0xf]
  %v226 = vld [vmem:[%s4 + $0x30] sm:$0xf]
  %v227 = vld [vmem:[%s4 + $0x34] sm:$0xf]
  %v228 = vld [vmem:[%s4 + $0x38] sm:$0xf]
  %v244 = vunpack.c.l.b16 %v214
  %v245 = vunpack.c.l.b16 %v215
  %v246 = vunpack.c.l.b16 %v216
  %v247 = vunpack.c.l.b16 %v217
  %v248 = vunpack.c.l.b16 %v218
  %v249 = vunpack.c.l.b16 %v219
  %v250 = vunpack.c.l.b16 %v220
  %v251 = vunpack.c.l.b16 %v221
  %v252 = vunpack.c.l.b16 %v222
  %v253 = vunpack.c.l.b16 %v223
  %v254 = vunpack.c.l.b16 %v224
  %v255 = vunpack.c.l.b16 %v225
  %v256 = vunpack.c.l.b16 %v226
  %v257 = vunpack.c.l.b16 %v227
  %v258 = vunpack.c.l.b16 %v228
  %v259 = vpack.c.b16 %v245, %v244
  %v260 = vpack.c.b16 %v247, %v246
  %v261 = vpack.c.b16 %v249, %v248
  %v262 = vpack.c.b16 %v251, %v250
  %v263 = vpack.c.b16 %v253, %v252
  %v264 = vpack.c.b16 %v255, %v254
  %v265 = vpack.c.b16 %v257, %v256
  %v266 = vpack.c.b16 %v258, %v258
  %v275 = vsel %vm132, %v266, 0
  %277 = vmatprep.subr.bf16.mxu0 0
  %278 = vmatpush1.bf16.msra.mxu0 %v275
  %279 = vmatprep.subr.bf16.mxu0 0
  %280 = vmatpush1.bf16.msra.mxu0 %v265
  %281 = vmatprep.subr.bf16.mxu0 0
  %282 = vmatpush1.bf16.msra.mxu0 %v264
  %283 = vmatprep.subr.bf16.mxu0 0
  %284 = vmatpush1.bf16.msra.mxu0 %v263
  %285 = vmatprep.subr.bf16.mxu0 0
  %286 = vmatpush1.bf16.msra.mxu0 %v262
  %287 = vmatprep.subr.bf16.mxu0 0
  %288 = vmatpush1.bf16.msra.mxu0 %v261
  %289 = vmatprep.subr.bf16.mxu0 0
  %290 = vmatpush1.bf16.msra.mxu0 %v260
  %291 = vmatprep.subr.bf16.mxu0 0
  %292 = vmatpush1.bf16.msra.mxu0 %v259
  %293 = vmatprep.subr.bf16.mxu0 0
  %294 = vmatpush2.bf16.msra.mxu0 0
  %295 = vmatprep.subr.bf16.mxu0 0
  %296 = vmatpush2.bf16.msra.mxu0 0
  %297 = vmatprep.subr.bf16.mxu0 0
  %298 = vmatpush2.bf16.msra.mxu0 0
  %299 = vmatprep.subr.bf16.mxu0 0
  %300 = vmatpush2.bf16.msra.mxu0 0
  %301 = vmatprep.subr.bf16.mxu0 0
  %302 = vmatpush2.bf16.msra.mxu0 0
  %303 = vmatprep.subr.bf16.mxu0 0
  %304 = vmatpush2.bf16.msra.mxu0 0
  %305 = vmatprep.subr.bf16.mxu0 0
  %306 = vmatpush2.bf16.msra.mxu0 0
  %307 = vmatprep.subr.bf16.mxu0 0
  %308 = vmatpush2.bf16.msra.mxu0 0
  %309 = vmatprep.mubr.bf16.mxu0 0
  %310 = vmatmul.mubr.bf16.gmra.mxu0 %v130
  %v311 = vpop.f32.mrf.mxu0
  %v312 = vadd.f32 0.0, %v311
  %v313 = vpop.f32.mrf.mxu0
  %v314 = vpop.f32.mrf.mxu0
  %v315 = vpop.f32.mrf.mxu0
  %316 = vdwg.mxu0
  %v347 = vunpack.c.l.b16 %v184
  %v348 = vunpack.c.l.b16 %v185
  %v349 = vunpack.c.l.b16 %v186
  %v350 = vunpack.c.l.b16 %v187
  %v351 = vunpack.c.l.b16 %v188
  %v352 = vunpack.c.l.b16 %v189
  %v353 = vunpack.c.l.b16 %v190
  %v354 = vunpack.c.l.b16 %v191
  %v355 = vunpack.c.l.b16 %v192
  %v356 = vunpack.c.l.b16 %v193
  %v357 = vunpack.c.l.b16 %v194
  %v358 = vunpack.c.l.b16 %v195
  %v359 = vunpack.c.l.b16 %v196
  %v360 = vunpack.c.l.b16 %v197
  %v361 = vunpack.c.l.b16 %v198
  %v362 = vunpack.c.l.b16 %v199
  %v363 = vunpack.c.l.b16 %v200
  %v364 = vunpack.c.l.b16 %v201
  %v365 = vunpack.c.l.b16 %v202
  %v366 = vunpack.c.l.b16 %v203
  %v367 = vunpack.c.l.b16 %v204
  %v368 = vunpack.c.l.b16 %v205
  %v369 = vunpack.c.l.b16 %v206
  %v370 = vunpack.c.l.b16 %v207
  %v371 = vunpack.c.l.b16 %v208
  %v372 = vunpack.c.l.b16 %v209
  %v373 = vunpack.c.l.b16 %v210
  %v374 = vunpack.c.l.b16 %v211
  %v375 = vunpack.c.l.b16 %v212
  %v376 = vunpack.c.l.b16 %v213
  %v377 = vpack.c.b16 %v348, %v347
  %v378 = vpack.c.b16 %v350, %v349
  %v379 = vpack.c.b16 %v352, %v351
  %v380 = vpack.c.b16 %v354, %v353
  %v381 = vpack.c.b16 %v356, %v355
  %v382 = vpack.c.b16 %v358, %v357
  %v383 = vpack.c.b16 %v360, %v359
  %v384 = vpack.c.b16 %v362, %v361
  %v385 = vpack.c.b16 %v364, %v363
  %v386 = vpack.c.b16 %v366, %v365
  %v387 = vpack.c.b16 %v368, %v367
  %v388 = vpack.c.b16 %v370, %v369
  %v389 = vpack.c.b16 %v372, %v371
  %v390 = vpack.c.b16 %v374, %v373
  %v391 = vpack.c.b16 %v376, %v375
  %vm407 = vcmask 916480
  %v409 = vsel %vm407, %v183, 0
  %411 = vmatprep.subr.bf16.mxu0 0
  %412 = vmatpush1.bf16.msra.mxu0 %v384
  %413 = vmatprep.subr.bf16.mxu0 0
  %414 = vmatpush1.bf16.msra.mxu0 %v383
  %415 = vmatprep.subr.bf16.mxu0 0
  %416 = vmatpush1.bf16.msra.mxu0 %v382
  %417 = vmatprep.subr.bf16.mxu0 0
  %418 = vmatpush1.bf16.msra.mxu0 %v381
  %419 = vmatprep.subr.bf16.mxu0 0
  %420 = vmatpush1.bf16.msra.mxu0 %v380
  %421 = vmatprep.subr.bf16.mxu0 0
  %422 = vmatpush1.bf16.msra.mxu0 %v379
  %423 = vmatprep.subr.bf16.mxu0 0
  %424 = vmatpush1.bf16.msra.mxu0 %v378
  %425 = vmatprep.subr.bf16.mxu0 0
  %426 = vmatpush1.bf16.msra.mxu0 %v377
  %427 = vmatprep.subr.bf16.mxu0 0
  %428 = vmatpush2.bf16.msra.mxu0 0
  %429 = vmatprep.subr.bf16.mxu0 0
  %430 = vmatpush2.bf16.msra.mxu0 %v391
  %431 = vmatprep.subr.bf16.mxu0 0
  %432 = vmatpush2.bf16.msra.mxu0 %v390
  %433 = vmatprep.subr.bf16.mxu0 0
  %434 = vmatpush2.bf16.msra.mxu0 %v389
  %435 = vmatprep.subr.bf16.mxu0 0
  %436 = vmatpush2.bf16.msra.mxu0 %v388
  %437 = vmatprep.subr.bf16.mxu0 0
  %438 = vmatpush2.bf16.msra.mxu0 %v387
  %439 = vmatprep.subr.bf16.mxu0 0
  %440 = vmatpush2.bf16.msra.mxu0 %v386
  %441 = vmatprep.subr.bf16.mxu0 0
  %442 = vmatpush2.bf16.msra.mxu0 %v385
  %443 = vmatprep.mubr.bf16.mxu0 %v409
  %444 = vmatmul.mubr.bf16.gmra.mxu0 %v182
  %v445 = vpop.f32.mrf.mxu0
  %v446 = vadd.f32 %v312, %v445
  %v447 = vpop.f32.mrf.mxu0
  %v448 = vpop.f32.mrf.mxu0
  %v449 = vpop.f32.mrf.mxu0
  %450 = vdwg.mxu0
  %v451 = vld [vmem:[%s5] sm:$0x1]
  %v453 = vlaneseq
  %v454 = vshrl.u32 %v453, 7
  %v455 = vsub.s32 0, %v454
  %v456 = vrot.slane %v451, %v455
  %v458 = vadd.f32 %v446, %v456
  %v459 = vmax.f32 %v458, 0.0
  %vm460 = vcmask 648192
  %461 = vst.msk [vmem:[%s6] sm:$0x3] %vm460, %v459
  // Predicated region
  $region26: #{encoder_forward.6} parent=0 // pred_check
    _
  $region27: #{encoder_forward.6} parent=0 // pred_check_branch
    %463 = sbr.rel (0) target = $region29
  $region28: #{encoder_forward.6} parent=0 // pred_region
    _
  $region29: #{encoder_forward.6} parent=0 // pred_fallthru
    _
  // Predicated region
  $region30: #{encoder_forward.6} parent=0 // pred_check
    _
  $region31: #{encoder_forward.6} parent=0 // pred_check_branch
    %465 = sbr.rel (0) target = $region33
  $region32: #{encoder_forward.6} parent=0 // pred_region
    _
  $region33: #{encoder_forward.6} parent=0 // pred_fallthru
    _

</llo_original>
